<compile_context>
chip_gen: v5e
topology: v5e:2x2
jax: 0.10.0
libtpu: 0.0.40
codegen_flags: <defaults>
</compile_context>

<pallas_src>
import functools

import numpy as np
import jax
import jax.numpy as jnp
from jax.experimental import pallas as pl
from jax.experimental.pallas import tpu as pltpu

# ---------------- model hyper-parameters (from the PyTorch module) ----------------
N_NODES = 68          # 68 facial landmarks
INPUT_DIM = 4         # (x, y, x_norm, y_norm)
HIDDEN_DIM = 64       # hidden_dim
OUTPUT_DIM = 7        # 7 emotions
NUM_LAYERS = 8
BN_EPS = 1e-5
BATCH = 2             # number of graphs

CONNECTIONS = [(0, 1), (1, 2), (2, 3), (3, 4), (4, 5), (5, 6), (6, 7), (7, 8), (9, 10),
               (10, 11), (11, 12), (12, 13), (13, 14), (14, 15), (15, 16), (17, 18),
               (18, 19), (19, 20), (20, 21), (22, 23), (23, 24), (24, 25), (25, 26),
               (27, 28), (28, 29), (29, 30), (30, 31), (31, 32), (32, 33), (33, 34),
               (34, 35), (36, 37), (37, 38), (38, 39), (39, 40), (40, 41), (41, 36),
               (42, 43), (43, 44), (44, 45), (45, 46), (46, 47), (47, 42), (48, 49),
               (49, 50), (50, 51), (51, 52), (52, 53), (53, 54), (54, 55), (55, 56),
               (56, 57), (57, 58), (58, 59), (59, 60), (60, 61), (61, 62), (62, 63),
               (63, 64), (64, 65), (65, 66), (66, 67), (67, 48), (60, 67), (61, 66),
               (62, 65), (63, 64)]


def build_normalized_adjacency(n, conns):
    """A_norm = D^-1/2 (A + I) D^-1/2, mirrors normalize_adjacency_matrix()."""
    A = np.zeros((n, n), dtype=np.float32)
    for i, j in conns:
        if i < n and j < n:
            A[i, j] = 1.0
            A[j, i] = 1.0
    A = A + np.eye(n, dtype=np.float32)
    d = A.sum(axis=1)
    d_inv_sqrt = 1.0 / np.sqrt(np.maximum(d, 1e-12))
    return ((d_inv_sqrt[:, None] * A) * d_inv_sqrt[None, :]).astype(np.float32)


# ------------------------------- fused Pallas kernel --------------------------------
def fused_gcn_kernel(adj_ref, x_ref, w_ref, b_ref, out_ref, *,
                     batch, input_dim, out_dim, num_mid, use_shift):
    """Entire SimpleGCN forward (all layers, pooling, head) for the whole batch.

    adj_ref : (N, N)        shared symmetric-normalized adjacency
    x_ref   : (B, N, Fin)   node features
    w_ref   : (L+3, H, H)   packed weights (BN scale folded):
                [0]=w_first (rows>=Fin zero)  [1..L-2]=w_mid  [L-1]=w_last
                [L]=fc1 mean-half  [L+1]=fc1 max-half  [L+2]=fc2 (cols>=O zero)
    b_ref   : (2L+1, H)     packed biases / BN shifts / fc biases
    out_ref : (B, O)        logits
    """
    f32 = jnp.float32
    n_conv = num_mid + 2                       # number of GCN layers (== NUM_LAYERS)

    adj = adj_ref[...]                         # (N, N)
    bias = b_ref[...]                          # (2*n_conv+1, H)
    w0 = w_ref[0][:input_dim, :]               # (Fin, H) first-layer weight

    means, maxs = [], []
    for b in range(batch):                     # statically unrolled over graphs
        xb = x_ref[b]                          # (N, Fin)

        # ---- layer 0:  relu( A (X W0') + b0' ) [+ shift0] ----
        xw = jnp.dot(xb, w0, preferred_element_type=f32)
        h = jnp.dot(adj, xw, preferred_element_type=f32) + bias[0:1, :]
        h = jnp.maximum(h, 0.0)
        if use_shift:
            h = h + bias[n_conv:n_conv + 1, :]

        # ---- middle residual layers:  h <- relu( A (h Wi') + bi' ) [+ shift_i] + h ----
        for i in range(num_mid):
            xw = jnp.dot(h, w_ref[1 + i], preferred_element_type=f32)
            z = jnp.dot(adj, xw, preferred_element_type=f32) + bias[1 + i:2 + i, :]
            z = jnp.maximum(z, 0.0)
            if use_shift:
                z = z + bias[n_conv + 1 + i:n_conv + 2 + i, :]
            h = z + h

        # ---- last layer: no BN, no residual ----
        xw = jnp.dot(h, w_ref[n_conv - 1], preferred_element_type=f32)
        z = jnp.dot(adj, xw, preferred_element_type=f32) + bias[n_conv - 1:n_conv, :]
        h = jnp.maximum(z, 0.0)                # (N, H)

        # ---- per-graph global mean/max pooling ----
        means.append(jnp.mean(h, axis=0, keepdims=True))
        maxs.append(jnp.max(h, axis=0, keepdims=True))

    g_mean = jnp.concatenate(means, axis=0)    # (B, H)
    g_max = jnp.concatenate(maxs, axis=0)      # (B, H)

    # ---- fc1 without lane-concat: cat([mean,max]) @ W1 == mean@W1a + max@W1b ----
    z1 = (jnp.dot(g_mean, w_ref[n_conv], preferred_element_type=f32)
          + jnp.dot(g_max, w_ref[n_conv + 1], preferred_element_type=f32)
          + bias[2 * n_conv - 1:2 * n_conv, :])
    z1 = jnp.maximum(z1, 0.0)

    # ---- fc2 (weight zero-padded to (H, H); only first out_dim lanes are real) ----
    logits = (jnp.dot(z1, w_ref[n_conv + 2], preferred_element_type=f32)
              + bias[2 * n_conv:2 * n_conv + 1, :])
    out_ref[...] = logits[:, :out_dim]


# ------------------------------- pallas_call wrapper --------------------------------
def simple_gcn_forward(adj, x, w_slab, b_slab, *, use_shift):
    """Jitted per-call path: exactly one op (the fused pallas_call)."""
    B, N, Fin = x.shape
    kernel = functools.partial(
        fused_gcn_kernel, batch=B, input_dim=Fin, out_dim=OUTPUT_DIM,
        num_mid=NUM_LAYERS - 2, use_shift=use_shift)
    vmem = lambda: pl.BlockSpec(memory_space=pltpu.MemorySpace.VMEM)
    return pl.pallas_call(
        kernel,
        out_shape=jax.ShapeDtypeStruct((B, OUTPUT_DIM), jnp.float32),
        in_specs=[vmem(), vmem(), vmem(), vmem()],
        out_specs=vmem(),
    )(adj, x, w_slab, b_slab)


# ------------------------------ one-time parameter packing --------------------------
def pack_params(params):
    """Fold eval-mode BN scale into weights/biases and pack everything into two
    slabs. Runs ONCE (host-side numpy), outside the jitted per-call path.

    w_slab (L+3, H, H): [0]=w_first(padded)  [1..L-2]=w_mid  [L-1]=w_last
                        [L]=fc1 mean-half    [L+1]=fc1 max-half  [L+2]=fc2(padded)
    b_slab (2L+1, H):   [0..L-1]=conv biases (folded)  [L..2L-2]=BN shifts
                        [2L-1]=fc1_b  [2L]=fc2_b(padded)
    """
    H, Fin, O, L = HIDDEN_DIM, INPUT_DIM, OUTPUT_DIM, NUM_LAYERS
    num_mid = L - 2

    gamma = np.asarray(params["bn_gamma"], np.float32)
    beta = np.asarray(params["bn_beta"], np.float32)
    mean = np.asarray(params["bn_mean"], np.float32)
    var = np.asarray(params["bn_var"], np.float32)
    scale = gamma / np.sqrt(var + BN_EPS)            # (L-1, H)
    shift = beta - mean * scale                      # (L-1, H)
    # relu(a)*s == relu(a*s) only holds for s > 0 (true for gamma > 0).
    assert np.all(scale > 0), "BN-scale folding requires positive scale (gamma > 0)"

    w_slab = np.zeros((L + 3, H, H), np.float32)
    b_slab = np.zeros((2 * L + 1, H), np.float32)

    w_slab[0, :Fin, :] = np.asarray(params["w_first"], np.float32) * scale[0][None, :]
    b_slab[0] = np.asarray(params["b_first"], np.float32) * scale[0]
    for i in range(num_mid):
        w_slab[1 + i] = np.asarray(params["w_mid"][i], np.float32) * scale[1 + i][None, :]
        b_slab[1 + i] = np.asarray(params["b_mid"][i], np.float32) * scale[1 + i]
    w_slab[L - 1] = np.asarray(params["w_last"], np.float32)
    b_slab[L - 1] = np.asarray(params["b_last"], np.float32)
    b_slab[L:2 * L - 1] = shift

    fc1_w = np.asarray(params["fc1_w"], np.float32)
    w_slab[L] = fc1_w[:H, :]                         # mean half
    w_slab[L + 1] = fc1_w[H:, :]                     # max half
    b_slab[2 * L - 1] = np.asarray(params["fc1_b"], np.float32)
    w_slab[L + 2, :, :O] = np.asarray(params["fc2_w"], np.float32)
    b_slab[2 * L, :O] = np.asarray(params["fc2_b"], np.float32)

    use_shift = bool(np.any(shift != 0.0))           # skip the adds if shifts are all zero
    return jnp.asarray(w_slab), jnp.asarray(b_slab), use_shift


# ------------------------------- parameters & reference -----------------------------
def init_params(key):
    H, Fin, O, L = HIDDEN_DIM, INPUT_DIM, OUTPUT_DIM, NUM_LAYERS
    ks = jax.random.split(key, 14)
    p = {}
    p["w_first"] = 0.1 * jax.random.normal(ks[0], (Fin, H), jnp.float32)
    p["b_first"] = 0.01 * jax.random.normal(ks[1], (H,), jnp.float32)
    p["w_mid"] = 0.1 * jax.random.normal(ks[2], (L - 2, H, H), jnp.float32)
    p["b_mid"] = 0.01 * jax.random.normal(ks[3], (L - 2, H), jnp.float32)
    p["w_last"] = 0.1 * jax.random.normal(ks[4], (H, H), jnp.float32)
    p["b_last"] = 0.01 * jax.random.normal(ks[5], (H,), jnp.float32)
    # BatchNorm1d eval-mode params / running stats (gamma, var > 0 so folding is valid).
    p["bn_gamma"] = 0.9 + 0.2 * jax.random.uniform(ks[6], (L - 1, H), jnp.float32)
    p["bn_beta"] = 0.05 * jax.random.normal(ks[7], (L - 1, H), jnp.float32)
    p["bn_mean"] = 0.05 * jax.random.normal(ks[8], (L - 1, H), jnp.float32)
    p["bn_var"] = 0.9 + 0.2 * jax.random.uniform(ks[9], (L - 1, H), jnp.float32)
    p["fc1_w"] = 0.1 * jax.random.normal(ks[10], (2 * H, H), jnp.float32)
    p["fc1_b"] = 0.01 * jax.random.normal(ks[11], (H,), jnp.float32)
    p["fc2_w"] = 0.1 * jax.random.normal(ks[12], (H, O), jnp.float32)
    p["fc2_b"] = 0.01 * jax.random.normal(ks[13], (O,), jnp.float32)
    return p


def simple_gcn_reference(params, adj, x):
    """Pure-JAX reference (unfolded BN, bias after propagation). Eval mode: dropout = id."""
    def gcn(h, w, b):
        return jnp.einsum("nm,bmf->bnf", adj, jnp.einsum("bnf,fh->bnh", h, w)) + b

    def bn(h, i):
        scale = params["bn_gamma"][i] / jnp.sqrt(params["bn_var"][i] + BN_EPS)
        shift = params["bn_beta"][i] - params["bn_mean"][i] * scale
        return h * scale + shift

    h = bn(jnp.maximum(gcn(x, params["w_first"], params["b_first"]), 0.0), 0)
    for i in range(NUM_LAYERS - 2):
        h = bn(jnp.maximum(gcn(h, params["w_mid"][i], params["b_mid"][i]), 0.0), i + 1) + h
    h = jnp.maximum(gcn(h, params["w_last"], params["b_last"]), 0.0)
    g = jnp.concatenate([jnp.mean(h, axis=1), jnp.max(h, axis=1)], axis=1)
    z = jnp.maximum(g @ params["fc1_w"] + params["fc1_b"], 0.0)
    return z @ params["fc2_w"] + params["fc2_b"]


if __name__ == "__main__":
    key = jax.random.PRNGKey(0)
    k_param, k_x = jax.random.split(key)

    params = init_params(k_param)
    adj = jnp.asarray(build_normalized_adjacency(N_NODES, CONNECTIONS))
    # node features: (B, N, 4) ~ (x, y, x_norm, y_norm)
    x = jax.random.normal(k_x, (BATCH, N_NODES, INPUT_DIM), jnp.float32)

    # One-time fold/pack (NOT in the jitted per-call path).
    w_slab, b_slab, use_shift = pack_params(params)

    fwd = jax.jit(functools.partial(simple_gcn_forward, use_shift=use_shift))
    out = jax.block_until_ready(fwd(adj, x, w_slab, b_slab))

    ref = jax.block_until_ready(simple_gcn_reference(params, adj, x))
    assert out.shape == (BATCH, OUTPUT_DIM)
    np.testing.assert_allclose(np.asarray(out), np.asarray(ref), rtol=2e-3, atol=2e-3)
    print("KERNEL_OK")
</pallas_src>

<mosaic_0001>
module attributes {stable_mosaic.version = 11 : i64} {
  func.func @fused_gcn_kernel(%arg0: memref<68x68xf32, #tpu.memory_space<vmem>>, %arg1: memref<2x68x4xf32, #tpu.memory_space<vmem>>, %arg2: memref<11x64x64xf32, #tpu.memory_space<vmem>>, %arg3: memref<17x64xf32, #tpu.memory_space<vmem>>, %arg4: memref<2x7xf32, #tpu.memory_space<vmem>>) attributes {dimension_semantics = [], scalar_prefetch = 0 : i64, scratch_operands = 0 : i64, tpu.core_type = #tpu.core_type<tc>} {
    %c0 = arith.constant 0 : index
    %c0_0 = arith.constant 0 : index
    %0 = vector.load %arg0[%c0, %c0_0] : memref<68x68xf32, #tpu.memory_space<vmem>>, vector<68x68xf32>
    %c0_1 = arith.constant 0 : index
    %c0_2 = arith.constant 0 : index
    %1 = vector.load %arg3[%c0_1, %c0_2] : memref<17x64xf32, #tpu.memory_space<vmem>>, vector<17x64xf32>
    %c0_3 = arith.constant 0 : index
    %c0_4 = arith.constant 0 : index
    %c0_5 = arith.constant 0 : index
    %2 = vector.load %arg2[%c0_3, %c0_4, %c0_5] : memref<11x64x64xf32, #tpu.memory_space<vmem>>, vector<1x64x64xf32>
    %3 = vector.shape_cast %2 : vector<1x64x64xf32> to vector<64x64xf32>
    %4 = vector.extract_strided_slice %3 {offsets = [0, 0], sizes = [4, 64], strides = [1, 1]} : vector<64x64xf32> to vector<4x64xf32>
    %c0_6 = arith.constant 0 : index
    %c0_7 = arith.constant 0 : index
    %c0_8 = arith.constant 0 : index
    %5 = vector.load %arg1[%c0_6, %c0_7, %c0_8] : memref<2x68x4xf32, #tpu.memory_space<vmem>>, vector<1x68x4xf32>
    %6 = vector.shape_cast %5 : vector<1x68x4xf32> to vector<68x4xf32>
    %cst = arith.constant dense<0.000000e+00> : vector<68x64xf32>
    %7 = tpu.matmul %6, %4, %cst {dimension_numbers = #tpu.dot_dimension_numbers<[1], [0], [0], [1], [0, 0, 1, 1], [], []>} : vector<68x4xf32>, vector<4x64xf32>, vector<68x64xf32> -> vector<68x64xf32>
    %cst_9 = arith.constant dense<0.000000e+00> : vector<68x64xf32>
    %8 = tpu.matmul %0, %7, %cst_9 {dimension_numbers = #tpu.dot_dimension_numbers<[1], [0], [0], [1], [0, 0, 1, 1], [], []>} : vector<68x68xf32>, vector<68x64xf32>, vector<68x64xf32> -> vector<68x64xf32>
    %9 = vector.extract_strided_slice %1 {offsets = [0, 0], sizes = [1, 64], strides = [1, 1]} : vector<17x64xf32> to vector<1x64xf32>
    %10 = vector.broadcast %9 : vector<1x64xf32> to vector<68x64xf32>
    %11 = arith.addf %8, %10 : vector<68x64xf32>
    %cst_10 = arith.constant 0.000000e+00 : f32
    %12 = vector.broadcast %cst_10 : f32 to vector<68x64xf32>
    %13 = arith.maximumf %11, %12 : vector<68x64xf32>
    %14 = vector.extract_strided_slice %1 {offsets = [8, 0], sizes = [1, 64], strides = [1, 1]} : vector<17x64xf32> to vector<1x64xf32>
    %15 = vector.broadcast %14 : vector<1x64xf32> to vector<68x64xf32>
    %16 = arith.addf %13, %15 : vector<68x64xf32>
    %c1 = arith.constant 1 : index
    %c0_11 = arith.constant 0 : index
    %c0_12 = arith.constant 0 : index
    %17 = vector.load %arg2[%c1, %c0_11, %c0_12] : memref<11x64x64xf32, #tpu.memory_space<vmem>>, vector<1x64x64xf32>
    %18 = vector.shape_cast %17 : vector<1x64x64xf32> to vector<64x64xf32>
    %cst_13 = arith.constant dense<0.000000e+00> : vector<68x64xf32>
    %19 = tpu.matmul %16, %18, %cst_13 {dimension_numbers = #tpu.dot_dimension_numbers<[1], [0], [0], [1], [0, 0, 1, 1], [], []>} : vector<68x64xf32>, vector<64x64xf32>, vector<68x64xf32> -> vector<68x64xf32>
    %cst_14 = arith.constant dense<0.000000e+00> : vector<68x64xf32>
    %20 = tpu.matmul %0, %19, %cst_14 {dimension_numbers = #tpu.dot_dimension_numbers<[1], [0], [0], [1], [0, 0, 1, 1], [], []>} : vector<68x68xf32>, vector<68x64xf32>, vector<68x64xf32> -> vector<68x64xf32>
    %21 = vector.extract_strided_slice %1 {offsets = [1, 0], sizes = [1, 64], strides = [1, 1]} : vector<17x64xf32> to vector<1x64xf32>
    %22 = vector.broadcast %21 : vector<1x64xf32> to vector<68x64xf32>
    %23 = arith.addf %20, %22 : vector<68x64xf32>
    %cst_15 = arith.constant 0.000000e+00 : f32
    %24 = vector.broadcast %cst_15 : f32 to vector<68x64xf32>
    %25 = arith.maximumf %23, %24 : vector<68x64xf32>
    %26 = vector.extract_strided_slice %1 {offsets = [9, 0], sizes = [1, 64], strides = [1, 1]} : vector<17x64xf32> to vector<1x64xf32>
    %27 = vector.broadcast %26 : vector<1x64xf32> to vector<68x64xf32>
    %28 = arith.addf %25, %27 : vector<68x64xf32>
    %29 = arith.addf %28, %16 : vector<68x64xf32>
    %c2 = arith.constant 2 : index
    %c0_16 = arith.constant 0 : index
    %c0_17 = arith.constant 0 : index
    %30 = vector.load %arg2[%c2, %c0_16, %c0_17] : memref<11x64x64xf32, #tpu.memory_space<vmem>>, vector<1x64x64xf32>
    %31 = vector.shape_cast %30 : vector<1x64x64xf32> to vector<64x64xf32>
    %cst_18 = arith.constant dense<0.000000e+00> : vector<68x64xf32>
    %32 = tpu.matmul %29, %31, %cst_18 {dimension_numbers = #tpu.dot_dimension_numbers<[1], [0], [0], [1], [0, 0, 1, 1], [], []>} : vector<68x64xf32>, vector<64x64xf32>, vector<68x64xf32> -> vector<68x64xf32>
    %cst_19 = arith.constant dense<0.000000e+00> : vector<68x64xf32>
    %33 = tpu.matmul %0, %32, %cst_19 {dimension_numbers = #tpu.dot_dimension_numbers<[1], [0], [0], [1], [0, 0, 1, 1], [], []>} : vector<68x68xf32>, vector<68x64xf32>, vector<68x64xf32> -> vector<68x64xf32>
    %34 = vector.extract_strided_slice %1 {offsets = [2, 0], sizes = [1, 64], strides = [1, 1]} : vector<17x64xf32> to vector<1x64xf32>
    %35 = vector.broadcast %34 : vector<1x64xf32> to vector<68x64xf32>
    %36 = arith.addf %33, %35 : vector<68x64xf32>
    %cst_20 = arith.constant 0.000000e+00 : f32
    %37 = vector.broadcast %cst_20 : f32 to vector<68x64xf32>
    %38 = arith.maximumf %36, %37 : vector<68x64xf32>
    %39 = vector.extract_strided_slice %1 {offsets = [10, 0], sizes = [1, 64], strides = [1, 1]} : vector<17x64xf32> to vector<1x64xf32>
    %40 = vector.broadcast %39 : vector<1x64xf32> to vector<68x64xf32>
    %41 = arith.addf %38, %40 : vector<68x64xf32>
    %42 = arith.addf %41, %29 : vector<68x64xf32>
    %c3 = arith.constant 3 : index
    %c0_21 = arith.constant 0 : index
    %c0_22 = arith.constant 0 : index
    %43 = vector.load %arg2[%c3, %c0_21, %c0_22] : memref<11x64x64xf32, #tpu.memory_space<vmem>>, vector<1x64x64xf32>
    %44 = vector.shape_cast %43 : vector<1x64x64xf32> to vector<64x64xf32>
    %cst_23 = arith.constant dense<0.000000e+00> : vector<68x64xf32>
    %45 = tpu.matmul %42, %44, %cst_23 {dimension_numbers = #tpu.dot_dimension_numbers<[1], [0], [0], [1], [0, 0, 1, 1], [], []>} : vector<68x64xf32>, vector<64x64xf32>, vector<68x64xf32> -> vector<68x64xf32>
    %cst_24 = arith.constant dense<0.000000e+00> : vector<68x64xf32>
    %46 = tpu.matmul %0, %45, %cst_24 {dimension_numbers = #tpu.dot_dimension_numbers<[1], [0], [0], [1], [0, 0, 1, 1], [], []>} : vector<68x68xf32>, vector<68x64xf32>, vector<68x64xf32> -> vector<68x64xf32>
    %47 = vector.extract_strided_slice %1 {offsets = [3, 0], sizes = [1, 64], strides = [1, 1]} : vector<17x64xf32> to vector<1x64xf32>
    %48 = vector.broadcast %47 : vector<1x64xf32> to vector<68x64xf32>
    %49 = arith.addf %46, %48 : vector<68x64xf32>
    %cst_25 = arith.constant 0.000000e+00 : f32
    %50 = vector.broadcast %cst_25 : f32 to vector<68x64xf32>
    %51 = arith.maximumf %49, %50 : vector<68x64xf32>
    %52 = vector.extract_strided_slice %1 {offsets = [11, 0], sizes = [1, 64], strides = [1, 1]} : vector<17x64xf32> to vector<1x64xf32>
    %53 = vector.broadcast %52 : vector<1x64xf32> to vector<68x64xf32>
    %54 = arith.addf %51, %53 : vector<68x64xf32>
    %55 = arith.addf %54, %42 : vector<68x64xf32>
    %c4 = arith.constant 4 : index
    %c0_26 = arith.constant 0 : index
    %c0_27 = arith.constant 0 : index
    %56 = vector.load %arg2[%c4, %c0_26, %c0_27] : memref<11x64x64xf32, #tpu.memory_space<vmem>>, vector<1x64x64xf32>
    %57 = vector.shape_cast %56 : vector<1x64x64xf32> to vector<64x64xf32>
    %cst_28 = arith.constant dense<0.000000e+00> : vector<68x64xf32>
    %58 = tpu.matmul %55, %57, %cst_28 {dimension_numbers = #tpu.dot_dimension_numbers<[1], [0], [0], [1], [0, 0, 1, 1], [], []>} : vector<68x64xf32>, vector<64x64xf32>, vector<68x64xf32> -> vector<68x64xf32>
    %cst_29 = arith.constant dense<0.000000e+00> : vector<68x64xf32>
    %59 = tpu.matmul %0, %58, %cst_29 {dimension_numbers = #tpu.dot_dimension_numbers<[1], [0], [0], [1], [0, 0, 1, 1], [], []>} : vector<68x68xf32>, vector<68x64xf32>, vector<68x64xf32> -> vector<68x64xf32>
    %60 = vector.extract_strided_slice %1 {offsets = [4, 0], sizes = [1, 64], strides = [1, 1]} : vector<17x64xf32> to vector<1x64xf32>
    %61 = vector.broadcast %60 : vector<1x64xf32> to vector<68x64xf32>
    %62 = arith.addf %59, %61 : vector<68x64xf32>
    %cst_30 = arith.constant 0.000000e+00 : f32
    %63 = vector.broadcast %cst_30 : f32 to vector<68x64xf32>
    %64 = arith.maximumf %62, %63 : vector<68x64xf32>
    %65 = vector.extract_strided_slice %1 {offsets = [12, 0], sizes = [1, 64], strides = [1, 1]} : vector<17x64xf32> to vector<1x64xf32>
    %66 = vector.broadcast %65 : vector<1x64xf32> to vector<68x64xf32>
    %67 = arith.addf %64, %66 : vector<68x64xf32>
    %68 = arith.addf %67, %55 : vector<68x64xf32>
    %c5 = arith.constant 5 : index
    %c0_31 = arith.constant 0 : index
    %c0_32 = arith.constant 0 : index
    %69 = vector.load %arg2[%c5, %c0_31, %c0_32] : memref<11x64x64xf32, #tpu.memory_space<vmem>>, vector<1x64x64xf32>
    %70 = vector.shape_cast %69 : vector<1x64x64xf32> to vector<64x64xf32>
    %cst_33 = arith.constant dense<0.000000e+00> : vector<68x64xf32>
    %71 = tpu.matmul %68, %70, %cst_33 {dimension_numbers = #tpu.dot_dimension_numbers<[1], [0], [0], [1], [0, 0, 1, 1], [], []>} : vector<68x64xf32>, vector<64x64xf32>, vector<68x64xf32> -> vector<68x64xf32>
    %cst_34 = arith.constant dense<0.000000e+00> : vector<68x64xf32>
    %72 = tpu.matmul %0, %71, %cst_34 {dimension_numbers = #tpu.dot_dimension_numbers<[1], [0], [0], [1], [0, 0, 1, 1], [], []>} : vector<68x68xf32>, vector<68x64xf32>, vector<68x64xf32> -> vector<68x64xf32>
    %73 = vector.extract_strided_slice %1 {offsets = [5, 0], sizes = [1, 64], strides = [1, 1]} : vector<17x64xf32> to vector<1x64xf32>
    %74 = vector.broadcast %73 : vector<1x64xf32> to vector<68x64xf32>
    %75 = arith.addf %72, %74 : vector<68x64xf32>
    %cst_35 = arith.constant 0.000000e+00 : f32
    %76 = vector.broadcast %cst_35 : f32 to vector<68x64xf32>
    %77 = arith.maximumf %75, %76 : vector<68x64xf32>
    %78 = vector.extract_strided_slice %1 {offsets = [13, 0], sizes = [1, 64], strides = [1, 1]} : vector<17x64xf32> to vector<1x64xf32>
    %79 = vector.broadcast %78 : vector<1x64xf32> to vector<68x64xf32>
    %80 = arith.addf %77, %79 : vector<68x64xf32>
    %81 = arith.addf %80, %68 : vector<68x64xf32>
    %c6 = arith.constant 6 : index
    %c0_36 = arith.constant 0 : index
    %c0_37 = arith.constant 0 : index
    %82 = vector.load %arg2[%c6, %c0_36, %c0_37] : memref<11x64x64xf32, #tpu.memory_space<vmem>>, vector<1x64x64xf32>
    %83 = vector.shape_cast %82 : vector<1x64x64xf32> to vector<64x64xf32>
    %cst_38 = arith.constant dense<0.000000e+00> : vector<68x64xf32>
    %84 = tpu.matmul %81, %83, %cst_38 {dimension_numbers = #tpu.dot_dimension_numbers<[1], [0], [0], [1], [0, 0, 1, 1], [], []>} : vector<68x64xf32>, vector<64x64xf32>, vector<68x64xf32> -> vector<68x64xf32>
    %cst_39 = arith.constant dense<0.000000e+00> : vector<68x64xf32>
    %85 = tpu.matmul %0, %84, %cst_39 {dimension_numbers = #tpu.dot_dimension_numbers<[1], [0], [0], [1], [0, 0, 1, 1], [], []>} : vector<68x68xf32>, vector<68x64xf32>, vector<68x64xf32> -> vector<68x64xf32>
    %86 = vector.extract_strided_slice %1 {offsets = [6, 0], sizes = [1, 64], strides = [1, 1]} : vector<17x64xf32> to vector<1x64xf32>
    %87 = vector.broadcast %86 : vector<1x64xf32> to vector<68x64xf32>
    %88 = arith.addf %85, %87 : vector<68x64xf32>
    %cst_40 = arith.constant 0.000000e+00 : f32
    %89 = vector.broadcast %cst_40 : f32 to vector<68x64xf32>
    %90 = arith.maximumf %88, %89 : vector<68x64xf32>
    %91 = vector.extract_strided_slice %1 {offsets = [14, 0], sizes = [1, 64], strides = [1, 1]} : vector<17x64xf32> to vector<1x64xf32>
    %92 = vector.broadcast %91 : vector<1x64xf32> to vector<68x64xf32>
    %93 = arith.addf %90, %92 : vector<68x64xf32>
    %94 = arith.addf %93, %81 : vector<68x64xf32>
    %c7 = arith.constant 7 : index
    %c0_41 = arith.constant 0 : index
    %c0_42 = arith.constant 0 : index
    %95 = vector.load %arg2[%c7, %c0_41, %c0_42] : memref<11x64x64xf32, #tpu.memory_space<vmem>>, vector<1x64x64xf32>
    %96 = vector.shape_cast %95 : vector<1x64x64xf32> to vector<64x64xf32>
    %cst_43 = arith.constant dense<0.000000e+00> : vector<68x64xf32>
    %97 = tpu.matmul %94, %96, %cst_43 {dimension_numbers = #tpu.dot_dimension_numbers<[1], [0], [0], [1], [0, 0, 1, 1], [], []>} : vector<68x64xf32>, vector<64x64xf32>, vector<68x64xf32> -> vector<68x64xf32>
    %cst_44 = arith.constant dense<0.000000e+00> : vector<68x64xf32>
    %98 = tpu.matmul %0, %97, %cst_44 {dimension_numbers = #tpu.dot_dimension_numbers<[1], [0], [0], [1], [0, 0, 1, 1], [], []>} : vector<68x68xf32>, vector<68x64xf32>, vector<68x64xf32> -> vector<68x64xf32>
    %99 = vector.extract_strided_slice %1 {offsets = [7, 0], sizes = [1, 64], strides = [1, 1]} : vector<17x64xf32> to vector<1x64xf32>
    %100 = vector.broadcast %99 : vector<1x64xf32> to vector<68x64xf32>
    %101 = arith.addf %98, %100 : vector<68x64xf32>
    %cst_45 = arith.constant 0.000000e+00 : f32
    %102 = vector.broadcast %cst_45 : f32 to vector<68x64xf32>
    %103 = arith.maximumf %101, %102 : vector<68x64xf32>
    %cst_46 = arith.constant dense<0.000000e+00> : vector<64xf32>
    %104 = vector.multi_reduction <add>, %103, %cst_46 [0] : vector<68x64xf32> to vector<64xf32>
    %105 = vector.shape_cast %104 : vector<64xf32> to vector<1x64xf32>
    %cst_47 = arith.constant 6.800000e+01 : f32
    %106 = vector.broadcast %cst_47 : f32 to vector<1x64xf32>
    %107 = arith.divf %105, %106 : vector<1x64xf32>
    %cst_48 = arith.constant dense<0xFF800000> : vector<64xf32>
    %108 = vector.multi_reduction <maximumf>, %103, %cst_48 [0] : vector<68x64xf32> to vector<64xf32>
    %109 = vector.shape_cast %108 : vector<64xf32> to vector<1x64xf32>
    %c1_49 = arith.constant 1 : index
    %c0_50 = arith.constant 0 : index
    %c0_51 = arith.constant 0 : index
    %110 = vector.load %arg1[%c1_49, %c0_50, %c0_51] : memref<2x68x4xf32, #tpu.memory_space<vmem>>, vector<1x68x4xf32>
    %111 = vector.shape_cast %110 : vector<1x68x4xf32> to vector<68x4xf32>
    %cst_52 = arith.constant dense<0.000000e+00> : vector<68x64xf32>
    %112 = tpu.matmul %111, %4, %cst_52 {dimension_numbers = #tpu.dot_dimension_numbers<[1], [0], [0], [1], [0, 0, 1, 1], [], []>} : vector<68x4xf32>, vector<4x64xf32>, vector<68x64xf32> -> vector<68x64xf32>
    %cst_53 = arith.constant dense<0.000000e+00> : vector<68x64xf32>
    %113 = tpu.matmul %0, %112, %cst_53 {dimension_numbers = #tpu.dot_dimension_numbers<[1], [0], [0], [1], [0, 0, 1, 1], [], []>} : vector<68x68xf32>, vector<68x64xf32>, vector<68x64xf32> -> vector<68x64xf32>
    %114 = vector.extract_strided_slice %1 {offsets = [0, 0], sizes = [1, 64], strides = [1, 1]} : vector<17x64xf32> to vector<1x64xf32>
    %115 = vector.broadcast %114 : vector<1x64xf32> to vector<68x64xf32>
    %116 = arith.addf %113, %115 : vector<68x64xf32>
    %cst_54 = arith.constant 0.000000e+00 : f32
    %117 = vector.broadcast %cst_54 : f32 to vector<68x64xf32>
    %118 = arith.maximumf %116, %117 : vector<68x64xf32>
    %119 = vector.extract_strided_slice %1 {offsets = [8, 0], sizes = [1, 64], strides = [1, 1]} : vector<17x64xf32> to vector<1x64xf32>
    %120 = vector.broadcast %119 : vector<1x64xf32> to vector<68x64xf32>
    %121 = arith.addf %118, %120 : vector<68x64xf32>
    %c1_55 = arith.constant 1 : index
    %c0_56 = arith.constant 0 : index
    %c0_57 = arith.constant 0 : index
    %122 = vector.load %arg2[%c1_55, %c0_56, %c0_57] : memref<11x64x64xf32, #tpu.memory_space<vmem>>, vector<1x64x64xf32>
    %123 = vector.shape_cast %122 : vector<1x64x64xf32> to vector<64x64xf32>
    %cst_58 = arith.constant dense<0.000000e+00> : vector<68x64xf32>
    %124 = tpu.matmul %121, %123, %cst_58 {dimension_numbers = #tpu.dot_dimension_numbers<[1], [0], [0], [1], [0, 0, 1, 1], [], []>} : vector<68x64xf32>, vector<64x64xf32>, vector<68x64xf32> -> vector<68x64xf32>
    %cst_59 = arith.constant dense<0.000000e+00> : vector<68x64xf32>
    %125 = tpu.matmul %0, %124, %cst_59 {dimension_numbers = #tpu.dot_dimension_numbers<[1], [0], [0], [1], [0, 0, 1, 1], [], []>} : vector<68x68xf32>, vector<68x64xf32>, vector<68x64xf32> -> vector<68x64xf32>
    %126 = vector.extract_strided_slice %1 {offsets = [1, 0], sizes = [1, 64], strides = [1, 1]} : vector<17x64xf32> to vector<1x64xf32>
    %127 = vector.broadcast %126 : vector<1x64xf32> to vector<68x64xf32>
    %128 = arith.addf %125, %127 : vector<68x64xf32>
    %cst_60 = arith.constant 0.000000e+00 : f32
    %129 = vector.broadcast %cst_60 : f32 to vector<68x64xf32>
    %130 = arith.maximumf %128, %129 : vector<68x64xf32>
    %131 = vector.extract_strided_slice %1 {offsets = [9, 0], sizes = [1, 64], strides = [1, 1]} : vector<17x64xf32> to vector<1x64xf32>
    %132 = vector.broadcast %131 : vector<1x64xf32> to vector<68x64xf32>
    %133 = arith.addf %130, %132 : vector<68x64xf32>
    %134 = arith.addf %133, %121 : vector<68x64xf32>
    %c2_61 = arith.constant 2 : index
    %c0_62 = arith.constant 0 : index
    %c0_63 = arith.constant 0 : index
    %135 = vector.load %arg2[%c2_61, %c0_62, %c0_63] : memref<11x64x64xf32, #tpu.memory_space<vmem>>, vector<1x64x64xf32>
    %136 = vector.shape_cast %135 : vector<1x64x64xf32> to vector<64x64xf32>
    %cst_64 = arith.constant dense<0.000000e+00> : vector<68x64xf32>
    %137 = tpu.matmul %134, %136, %cst_64 {dimension_numbers = #tpu.dot_dimension_numbers<[1], [0], [0], [1], [0, 0, 1, 1], [], []>} : vector<68x64xf32>, vector<64x64xf32>, vector<68x64xf32> -> vector<68x64xf32>
    %cst_65 = arith.constant dense<0.000000e+00> : vector<68x64xf32>
    %138 = tpu.matmul %0, %137, %cst_65 {dimension_numbers = #tpu.dot_dimension_numbers<[1], [0], [0], [1], [0, 0, 1, 1], [], []>} : vector<68x68xf32>, vector<68x64xf32>, vector<68x64xf32> -> vector<68x64xf32>
    %139 = vector.extract_strided_slice %1 {offsets = [2, 0], sizes = [1, 64], strides = [1, 1]} : vector<17x64xf32> to vector<1x64xf32>
    %140 = vector.broadcast %139 : vector<1x64xf32> to vector<68x64xf32>
    %141 = arith.addf %138, %140 : vector<68x64xf32>
    %cst_66 = arith.constant 0.000000e+00 : f32
    %142 = vector.broadcast %cst_66 : f32 to vector<68x64xf32>
    %143 = arith.maximumf %141, %142 : vector<68x64xf32>
    %144 = vector.extract_strided_slice %1 {offsets = [10, 0], sizes = [1, 64], strides = [1, 1]} : vector<17x64xf32> to vector<1x64xf32>
    %145 = vector.broadcast %144 : vector<1x64xf32> to vector<68x64xf32>
    %146 = arith.addf %143, %145 : vector<68x64xf32>
    %147 = arith.addf %146, %134 : vector<68x64xf32>
    %c3_67 = arith.constant 3 : index
    %c0_68 = arith.constant 0 : index
    %c0_69 = arith.constant 0 : index
    %148 = vector.load %arg2[%c3_67, %c0_68, %c0_69] : memref<11x64x64xf32, #tpu.memory_space<vmem>>, vector<1x64x64xf32>
    %149 = vector.shape_cast %148 : vector<1x64x64xf32> to vector<64x64xf32>
    %cst_70 = arith.constant dense<0.000000e+00> : vector<68x64xf32>
    %150 = tpu.matmul %147, %149, %cst_70 {dimension_numbers = #tpu.dot_dimension_numbers<[1], [0], [0], [1], [0, 0, 1, 1], [], []>} : vector<68x64xf32>, vector<64x64xf32>, vector<68x64xf32> -> vector<68x64xf32>
    %cst_71 = arith.constant dense<0.000000e+00> : vector<68x64xf32>
    %151 = tpu.matmul %0, %150, %cst_71 {dimension_numbers = #tpu.dot_dimension_numbers<[1], [0], [0], [1], [0, 0, 1, 1], [], []>} : vector<68x68xf32>, vector<68x64xf32>, vector<68x64xf32> -> vector<68x64xf32>
    %152 = vector.extract_strided_slice %1 {offsets = [3, 0], sizes = [1, 64], strides = [1, 1]} : vector<17x64xf32> to vector<1x64xf32>
    %153 = vector.broadcast %152 : vector<1x64xf32> to vector<68x64xf32>
    %154 = arith.addf %151, %153 : vector<68x64xf32>
    %cst_72 = arith.constant 0.000000e+00 : f32
    %155 = vector.broadcast %cst_72 : f32 to vector<68x64xf32>
    %156 = arith.maximumf %154, %155 : vector<68x64xf32>
    %157 = vector.extract_strided_slice %1 {offsets = [11, 0], sizes = [1, 64], strides = [1, 1]} : vector<17x64xf32> to vector<1x64xf32>
    %158 = vector.broadcast %157 : vector<1x64xf32> to vector<68x64xf32>
    %159 = arith.addf %156, %158 : vector<68x64xf32>
    %160 = arith.addf %159, %147 : vector<68x64xf32>
    %c4_73 = arith.constant 4 : index
    %c0_74 = arith.constant 0 : index
    %c0_75 = arith.constant 0 : index
    %161 = vector.load %arg2[%c4_73, %c0_74, %c0_75] : memref<11x64x64xf32, #tpu.memory_space<vmem>>, vector<1x64x64xf32>
    %162 = vector.shape_cast %161 : vector<1x64x64xf32> to vector<64x64xf32>
    %cst_76 = arith.constant dense<0.000000e+00> : vector<68x64xf32>
    %163 = tpu.matmul %160, %162, %cst_76 {dimension_numbers = #tpu.dot_dimension_numbers<[1], [0], [0], [1], [0, 0, 1, 1], [], []>} : vector<68x64xf32>, vector<64x64xf32>, vector<68x64xf32> -> vector<68x64xf32>
    %cst_77 = arith.constant dense<0.000000e+00> : vector<68x64xf32>
    %164 = tpu.matmul %0, %163, %cst_77 {dimension_numbers = #tpu.dot_dimension_numbers<[1], [0], [0], [1], [0, 0, 1, 1], [], []>} : vector<68x68xf32>, vector<68x64xf32>, vector<68x64xf32> -> vector<68x64xf32>
    %165 = vector.extract_strided_slice %1 {offsets = [4, 0], sizes = [1, 64], strides = [1, 1]} : vector<17x64xf32> to vector<1x64xf32>
    %166 = vector.broadcast %165 : vector<1x64xf32> to vector<68x64xf32>
    %167 = arith.addf %164, %166 : vector<68x64xf32>
    %cst_78 = arith.constant 0.000000e+00 : f32
    %168 = vector.broadcast %cst_78 : f32 to vector<68x64xf32>
    %169 = arith.maximumf %167, %168 : vector<68x64xf32>
    %170 = vector.extract_strided_slice %1 {offsets = [12, 0], sizes = [1, 64], strides = [1, 1]} : vector<17x64xf32> to vector<1x64xf32>
    %171 = vector.broadcast %170 : vector<1x64xf32> to vector<68x64xf32>
    %172 = arith.addf %169, %171 : vector<68x64xf32>
    %173 = arith.addf %172, %160 : vector<68x64xf32>
    %c5_79 = arith.constant 5 : index
    %c0_80 = arith.constant 0 : index
    %c0_81 = arith.constant 0 : index
    %174 = vector.load %arg2[%c5_79, %c0_80, %c0_81] : memref<11x64x64xf32, #tpu.memory_space<vmem>>, vector<1x64x64xf32>
    %175 = vector.shape_cast %174 : vector<1x64x64xf32> to vector<64x64xf32>
    %cst_82 = arith.constant dense<0.000000e+00> : vector<68x64xf32>
    %176 = tpu.matmul %173, %175, %cst_82 {dimension_numbers = #tpu.dot_dimension_numbers<[1], [0], [0], [1], [0, 0, 1, 1], [], []>} : vector<68x64xf32>, vector<64x64xf32>, vector<68x64xf32> -> vector<68x64xf32>
    %cst_83 = arith.constant dense<0.000000e+00> : vector<68x64xf32>
    %177 = tpu.matmul %0, %176, %cst_83 {dimension_numbers = #tpu.dot_dimension_numbers<[1], [0], [0], [1], [0, 0, 1, 1], [], []>} : vector<68x68xf32>, vector<68x64xf32>, vector<68x64xf32> -> vector<68x64xf32>
    %178 = vector.extract_strided_slice %1 {offsets = [5, 0], sizes = [1, 64], strides = [1, 1]} : vector<17x64xf32> to vector<1x64xf32>
    %179 = vector.broadcast %178 : vector<1x64xf32> to vector<68x64xf32>
    %180 = arith.addf %177, %179 : vector<68x64xf32>
    %cst_84 = arith.constant 0.000000e+00 : f32
    %181 = vector.broadcast %cst_84 : f32 to vector<68x64xf32>
    %182 = arith.maximumf %180, %181 : vector<68x64xf32>
    %183 = vector.extract_strided_slice %1 {offsets = [13, 0], sizes = [1, 64], strides = [1, 1]} : vector<17x64xf32> to vector<1x64xf32>
    %184 = vector.broadcast %183 : vector<1x64xf32> to vector<68x64xf32>
    %185 = arith.addf %182, %184 : vector<68x64xf32>
    %186 = arith.addf %185, %173 : vector<68x64xf32>
    %c6_85 = arith.constant 6 : index
    %c0_86 = arith.constant 0 : index
    %c0_87 = arith.constant 0 : index
    %187 = vector.load %arg2[%c6_85, %c0_86, %c0_87] : memref<11x64x64xf32, #tpu.memory_space<vmem>>, vector<1x64x64xf32>
    %188 = vector.shape_cast %187 : vector<1x64x64xf32> to vector<64x64xf32>
    %cst_88 = arith.constant dense<0.000000e+00> : vector<68x64xf32>
    %189 = tpu.matmul %186, %188, %cst_88 {dimension_numbers = #tpu.dot_dimension_numbers<[1], [0], [0], [1], [0, 0, 1, 1], [], []>} : vector<68x64xf32>, vector<64x64xf32>, vector<68x64xf32> -> vector<68x64xf32>
    %cst_89 = arith.constant dense<0.000000e+00> : vector<68x64xf32>
    %190 = tpu.matmul %0, %189, %cst_89 {dimension_numbers = #tpu.dot_dimension_numbers<[1], [0], [0], [1], [0, 0, 1, 1], [], []>} : vector<68x68xf32>, vector<68x64xf32>, vector<68x64xf32> -> vector<68x64xf32>
    %191 = vector.extract_strided_slice %1 {offsets = [6, 0], sizes = [1, 64], strides = [1, 1]} : vector<17x64xf32> to vector<1x64xf32>
    %192 = vector.broadcast %191 : vector<1x64xf32> to vector<68x64xf32>
    %193 = arith.addf %190, %192 : vector<68x64xf32>
    %cst_90 = arith.constant 0.000000e+00 : f32
    %194 = vector.broadcast %cst_90 : f32 to vector<68x64xf32>
    %195 = arith.maximumf %193, %194 : vector<68x64xf32>
    %196 = vector.extract_strided_slice %1 {offsets = [14, 0], sizes = [1, 64], strides = [1, 1]} : vector<17x64xf32> to vector<1x64xf32>
    %197 = vector.broadcast %196 : vector<1x64xf32> to vector<68x64xf32>
    %198 = arith.addf %195, %197 : vector<68x64xf32>
    %199 = arith.addf %198, %186 : vector<68x64xf32>
    %c7_91 = arith.constant 7 : index
    %c0_92 = arith.constant 0 : index
    %c0_93 = arith.constant 0 : index
    %200 = vector.load %arg2[%c7_91, %c0_92, %c0_93] : memref<11x64x64xf32, #tpu.memory_space<vmem>>, vector<1x64x64xf32>
    %201 = vector.shape_cast %200 : vector<1x64x64xf32> to vector<64x64xf32>
    %cst_94 = arith.constant dense<0.000000e+00> : vector<68x64xf32>
    %202 = tpu.matmul %199, %201, %cst_94 {dimension_numbers = #tpu.dot_dimension_numbers<[1], [0], [0], [1], [0, 0, 1, 1], [], []>} : vector<68x64xf32>, vector<64x64xf32>, vector<68x64xf32> -> vector<68x64xf32>
    %cst_95 = arith.constant dense<0.000000e+00> : vector<68x64xf32>
    %203 = tpu.matmul %0, %202, %cst_95 {dimension_numbers = #tpu.dot_dimension_numbers<[1], [0], [0], [1], [0, 0, 1, 1], [], []>} : vector<68x68xf32>, vector<68x64xf32>, vector<68x64xf32> -> vector<68x64xf32>
    %204 = vector.extract_strided_slice %1 {offsets = [7, 0], sizes = [1, 64], strides = [1, 1]} : vector<17x64xf32> to vector<1x64xf32>
    %205 = vector.broadcast %204 : vector<1x64xf32> to vector<68x64xf32>
    %206 = arith.addf %203, %205 : vector<68x64xf32>
    %cst_96 = arith.constant 0.000000e+00 : f32
    %207 = vector.broadcast %cst_96 : f32 to vector<68x64xf32>
    %208 = arith.maximumf %206, %207 : vector<68x64xf32>
    %cst_97 = arith.constant dense<0.000000e+00> : vector<64xf32>
    %209 = vector.multi_reduction <add>, %208, %cst_97 [0] : vector<68x64xf32> to vector<64xf32>
    %210 = vector.shape_cast %209 : vector<64xf32> to vector<1x64xf32>
    %cst_98 = arith.constant 6.800000e+01 : f32
    %211 = vector.broadcast %cst_98 : f32 to vector<1x64xf32>
    %212 = arith.divf %210, %211 : vector<1x64xf32>
    %cst_99 = arith.constant dense<0xFF800000> : vector<64xf32>
    %213 = vector.multi_reduction <maximumf>, %208, %cst_99 [0] : vector<68x64xf32> to vector<64xf32>
    %214 = vector.shape_cast %213 : vector<64xf32> to vector<1x64xf32>
    %215 = tpu.concatenate %107, %212 in 0 : vector<1x64xf32>, vector<1x64xf32> -> vector<2x64xf32>
    %216 = tpu.concatenate %109, %214 in 0 : vector<1x64xf32>, vector<1x64xf32> -> vector<2x64xf32>
    %c8 = arith.constant 8 : index
    %c0_100 = arith.constant 0 : index
    %c0_101 = arith.constant 0 : index
    %217 = vector.load %arg2[%c8, %c0_100, %c0_101] : memref<11x64x64xf32, #tpu.memory_space<vmem>>, vector<1x64x64xf32>
    %218 = vector.shape_cast %217 : vector<1x64x64xf32> to vector<64x64xf32>
    %cst_102 = arith.constant dense<0.000000e+00> : vector<2x64xf32>
    %219 = tpu.matmul %215, %218, %cst_102 {dimension_numbers = #tpu.dot_dimension_numbers<[1], [0], [0], [1], [0, 0, 1, 1], [], []>} : vector<2x64xf32>, vector<64x64xf32>, vector<2x64xf32> -> vector<2x64xf32>
    %c9 = arith.constant 9 : index
    %c0_103 = arith.constant 0 : index
    %c0_104 = arith.constant 0 : index
    %220 = vector.load %arg2[%c9, %c0_103, %c0_104] : memref<11x64x64xf32, #tpu.memory_space<vmem>>, vector<1x64x64xf32>
    %221 = vector.shape_cast %220 : vector<1x64x64xf32> to vector<64x64xf32>
    %cst_105 = arith.constant dense<0.000000e+00> : vector<2x64xf32>
    %222 = tpu.matmul %216, %221, %cst_105 {dimension_numbers = #tpu.dot_dimension_numbers<[1], [0], [0], [1], [0, 0, 1, 1], [], []>} : vector<2x64xf32>, vector<64x64xf32>, vector<2x64xf32> -> vector<2x64xf32>
    %223 = arith.addf %219, %222 : vector<2x64xf32>
    %224 = vector.extract_strided_slice %1 {offsets = [15, 0], sizes = [1, 64], strides = [1, 1]} : vector<17x64xf32> to vector<1x64xf32>
    %225 = vector.broadcast %224 : vector<1x64xf32> to vector<2x64xf32>
    %226 = arith.addf %223, %225 : vector<2x64xf32>
    %cst_106 = arith.constant 0.000000e+00 : f32
    %227 = vector.broadcast %cst_106 : f32 to vector<2x64xf32>
    %228 = arith.maximumf %226, %227 : vector<2x64xf32>
    %c10 = arith.constant 10 : index
    %c0_107 = arith.constant 0 : index
    %c0_108 = arith.constant 0 : index
    %229 = vector.load %arg2[%c10, %c0_107, %c0_108] : memref<11x64x64xf32, #tpu.memory_space<vmem>>, vector<1x64x64xf32>
    %230 = vector.shape_cast %229 : vector<1x64x64xf32> to vector<64x64xf32>
    %cst_109 = arith.constant dense<0.000000e+00> : vector<2x64xf32>
    %231 = tpu.matmul %228, %230, %cst_109 {dimension_numbers = #tpu.dot_dimension_numbers<[1], [0], [0], [1], [0, 0, 1, 1], [], []>} : vector<2x64xf32>, vector<64x64xf32>, vector<2x64xf32> -> vector<2x64xf32>
    %232 = vector.extract_strided_slice %1 {offsets = [16, 0], sizes = [1, 64], strides = [1, 1]} : vector<17x64xf32> to vector<1x64xf32>
    %233 = vector.broadcast %232 : vector<1x64xf32> to vector<2x64xf32>
    %234 = arith.addf %231, %233 : vector<2x64xf32>
    %235 = vector.extract_strided_slice %234 {offsets = [0, 0], sizes = [2, 7], strides = [1, 1]} : vector<2x64xf32> to vector<2x7xf32>
    %c0_110 = arith.constant 0 : index
    %c0_111 = arith.constant 0 : index
    %236 = vector.load %arg4[%c0_110, %c0_111] : memref<2x7xf32, #tpu.memory_space<vmem>>, vector<2x7xf32>
    tpu.vector_store %arg4[%c0_110, %c0_111], %235 {strides = array<i32>} : memref<2x7xf32, #tpu.memory_space<vmem>>, vector<2x7xf32>,
    return
  }
}

</mosaic_0001>

<llo_original>
// kernel: simple_gcn_forward.1
$region0: #{simple_gcn_forward.1}
  #allocation0 [shape = 'u32[]', space=smem, size = 0x4, offset = 0x4, fixed_abs, tag = 'smem constant byte address 0x4 - core index']
  #allocation1 [shape = 'u32[72,128]{1,0:T(1,128)}', space=vmem, size = 0x9000, scoped, tag = 'internal scratch']
  %s0 = inlined_call_operand.vmem [shape: f32[68,68], index: 0, kind: input, shape index: {}]
  %s1 = inlined_call_operand.vmem [shape: f32[2,68,4], index: 1, kind: input, shape index: {}]
  %s2 = inlined_call_operand.hbm [shape: f32[11,64,64], index: 2, kind: input, shape index: {}]
  %s3 = inlined_call_operand.vmem [shape: f32[17,64], index: 3, kind: input, shape index: {}]
  %s4 = inlined_call_operand.hbm [shape: f32[2,7], index: 4, kind: output, shape index: {}]
  %s5 = sld [smem:[#allocation0]]
  $region30: #{simple_gcn_forward.1} parent=0
    _
  %s7 = ssub.s32 1, %s5
  %s8 = scalar_select 0, %s7, %s5
  $region1: #{simple_gcn_forward.1} parent=0
    #allocation2 [shape = 'u8[360448]{0}', space=vmem, size = 0x58000, scoped, tag = 'input window, operand 2, single buffered']
    #allocation3 [shape = 's32[1]{0}', space=sflag, size = 0x4, scoped, tag = 'scoped memory for simple_gcn_forward.1']
    #allocation4 [shape = 's32[1]{0}', space=sflag, size = 0x4, scoped, tag = 'scoped memory for simple_gcn_forward.1']
    #allocation5 [shape = 'u8[1024]{0}', space=vmem, size = 0x400, scoped, tag = 'output window, operand 0, single buffered']
    %9 = vsyncpa [#allocation3], 0
    %10 = vsyncpa [#allocation4], 0
    // Predicated region
    $region2: #{simple_gcn_forward.1} parent=1 // pred_check
      _
    $region3: #{simple_gcn_forward.1} parent=1 // pred_check_branch
      %12 = sbr.rel (0) target = $region5
    $region4: #{simple_gcn_forward.1} parent=1 // pred_region
      _
    $region5: #{simple_gcn_forward.1} parent=1 // pred_fallthru
      _
    // Predicated region
    $region6: #{simple_gcn_forward.1} parent=1 // pred_check
      _
    $region7: #{simple_gcn_forward.1} parent=1 // pred_check_branch
      %14 = sbr.rel (0) target = $region9
    $region8: #{simple_gcn_forward.1} parent=1 // pred_region
      _
    $region9: #{simple_gcn_forward.1} parent=1 // pred_fallthru
      _
    // Predicated region
    $region10: #{simple_gcn_forward.1} parent=1 // pred_check
      _
    $region11: #{simple_gcn_forward.1} parent=1 // pred_check_branch
      %16 = sbr.rel (0) target = $region13
    $region12: #{simple_gcn_forward.1} parent=1 // pred_region
      %18 = vsyncadd [#allocation3], 0
      %s19 = sshll.u32 %s2, 4
      %s20 = int_to_ptr.hbm [resolvable:$true] %s19
      %s21 = sshll.u32 [#allocation2], 4
      %s22 = int_to_ptr.vmem [resolvable:$true] %s21
      %27 = dma.hbm_to_vmem [thread:$0]  %s20, 11264, %s22, [#allocation3], 128, 128, 8
    $region13: #{simple_gcn_forward.1} parent=1 // pred_fallthru
      _
    // Predicated region
    $region14: #{simple_gcn_forward.1} parent=1 // pred_check
      _
    $region15: #{simple_gcn_forward.1} parent=1 // pred_check_branch
      %29 = sbr.rel (0) target = $region17
    $region16: #{simple_gcn_forward.1} parent=1 // pred_region
      _
    $region17: #{simple_gcn_forward.1} parent=1 // pred_fallthru
      _
    // Predicated region
    $region18: #{simple_gcn_forward.1} parent=1 // pred_check
      _
    $region19: #{simple_gcn_forward.1} parent=1 // pred_check_branch
      %31 = sbr.rel (0) target = $region21
    $region20: #{simple_gcn_forward.1} parent=1 // pred_region
      %33 = dma.done [#allocation3], 11264
    $region21: #{simple_gcn_forward.1} parent=1 // pred_fallthru
      _
    %v34 = vld [vmem:[%s0] sm:$0xff]
    %v35 = vld [vmem:[%s0 + $0x8] sm:$0xff]
    %v36 = vld [vmem:[%s0 + $0x10] sm:$0xff]
    %v37 = vld [vmem:[%s0 + $0x18] sm:$0xff]
    %v38 = vld [vmem:[%s0 + $0x20] sm:$0xff]
    %v39 = vld [vmem:[%s0 + $0x28] sm:$0xff]
    %v40 = vld [vmem:[%s0 + $0x30] sm:$0xff]
    %v41 = vld [vmem:[%s0 + $0x38] sm:$0xff]
    %v42 = vld [vmem:[%s0 + $0x40] sm:$0xf]
    %v43 = vld [vmem:[%s3] sm:$0xff]
    %v44 = vld [vmem:[%s3 + $0x8] sm:$0xff]
    %v45 = vld [vmem:[%s3 + $0x10] sm:$0x1]
    %v46 = vld [vmem:[#allocation2] sm:$0xff]
    %v47 = vld [vmem:[%s1] sm:$0xff]
    %v48 = vld [vmem:[%s1 + $0x8] sm:$0xff]
    %v49 = vld [vmem:[%s1 + $0x10] sm:$0xff]
    %v50 = vld [vmem:[%s1 + $0x18] sm:$0xff]
    %v51 = vld [vmem:[%s1 + $0x20] sm:$0xff]
    %v52 = vld [vmem:[%s1 + $0x28] sm:$0xff]
    %v53 = vld [vmem:[%s1 + $0x30] sm:$0xff]
    %v54 = vld [vmem:[%s1 + $0x38] sm:$0xff]
    %v55 = vld [vmem:[%s1 + $0x40] sm:$0xf]
    %vm56 = vcmask 31744
    %v58 = vsel %vm56, %v47, 0
    %v61 = vsel %vm56, %v48, 0
    %v64 = vsel %vm56, %v49, 0
    %v67 = vsel %vm56, %v50, 0
    %v70 = vsel %vm56, %v51, 0
    %v73 = vsel %vm56, %v52, 0
    %v76 = vsel %vm56, %v53, 0
    %v79 = vsel %vm56, %v54, 0
    %v82 = vsel %vm56, %v55, 0
    %vm84 = vcmask 1043456
    %v86 = vsel %vm84, %v46, 0
    %88 = vmatpush.msra.mxu0 0.0
    %89 = vmatpush.msra.mxu0 0.0
    %90 = vmatpush.msra.mxu0 0.0
    %91 = vmatpush.msra.mxu0 0.0
    %92 = vmatpush.msra.mxu0 0.0
    %93 = vmatpush.msra.mxu0 0.0
    %94 = vmatpush.msra.mxu0 0.0
    %95 = vmatpush.msra.mxu0 0.0
    %96 = vmatpush.msra.mxu0 0.0
    %97 = vmatpush.msra.mxu0 0.0
    %98 = vmatpush.msra.mxu0 0.0
    %99 = vmatpush.msra.mxu0 0.0
    %100 = vmatpush.msra.mxu0 0.0
    %101 = vmatpush.msra.mxu0 0.0
    %102 = vmatpush.msra.mxu0 0.0
    %103 = vmatpush.msra.mxu0 %v86
    %104 = vmatmul.f32.gmra.mxu0 %v58
    %v105 = vpop.f32.mrf.mxu0
    %v106 = vadd.f32 0.0, %v105
    %107 = vmatmul.f32.gmra.mxu0 %v61
    %v108 = vpop.f32.mrf.mxu0
    %v109 = vadd.f32 0.0, %v108
    %110 = vmatmul.f32.gmra.mxu0 %v64
    %v111 = vpop.f32.mrf.mxu0
    %v112 = vadd.f32 0.0, %v111
    %113 = vmatmul.f32.gmra.mxu0 %v67
    %v114 = vpop.f32.mrf.mxu0
    %v115 = vadd.f32 0.0, %v114
    %116 = vmatmul.f32.gmra.mxu0 %v70
    %v117 = vpop.f32.mrf.mxu0
    %v118 = vadd.f32 0.0, %v117
    %119 = vmatmul.f32.gmra.mxu0 %v73
    %v120 = vpop.f32.mrf.mxu0
    %v121 = vadd.f32 0.0, %v120
    %122 = vmatmul.f32.gmra.mxu0 %v76
    %v123 = vpop.f32.mrf.mxu0
    %v124 = vadd.f32 0.0, %v123
    %125 = vmatmul.f32.gmra.mxu0 %v79
    %v126 = vpop.f32.mrf.mxu0
    %v127 = vadd.f32 0.0, %v126
    %128 = vmatmul.f32.gmra.mxu0 %v82
    %v129 = vpop.f32.mrf.mxu0
    %v130 = vadd.f32 0.0, %v129
    %131 = vdwg.mxu0
    %v132 = vperm.slane %v43, 0
    %vm133 = vcmask 556032
    %v135 = vsel %vm133, %v34, 0
    %v138 = vsel %vm133, %v35, 0
    %v141 = vsel %vm133, %v36, 0
    %v144 = vsel %vm133, %v37, 0
    %v147 = vsel %vm133, %v38, 0
    %v150 = vsel %vm133, %v39, 0
    %v153 = vsel %vm133, %v40, 0
    %v156 = vsel %vm133, %v41, 0
    %v159 = vsel %vm133, %v42, 0
    %v162 = vsel %vm84, %v130, 0
    %164 = vmatpush.msra.mxu0 0.0
    %165 = vmatpush.msra.mxu0 0.0
    %166 = vmatpush.msra.mxu0 0.0
    %167 = vmatpush.msra.mxu0 0.0
    %168 = vmatpush.msra.mxu0 0.0
    %169 = vmatpush.msra.mxu0 0.0
    %170 = vmatpush.msra.mxu0 0.0
    %171 = vmatpush.msra.mxu0 %v162
    %172 = vmatpush.msra.mxu0 %v127
    %173 = vmatpush.msra.mxu0 %v124
    %174 = vmatpush.msra.mxu0 %v121
    %175 = vmatpush.msra.mxu0 %v118
    %176 = vmatpush.msra.mxu0 %v115
    %177 = vmatpush.msra.mxu0 %v112
    %178 = vmatpush.msra.mxu0 %v109
    %179 = vmatpush.msra.mxu0 %v106
    %180 = vmatmul.f32.gmra.mxu0 %v135
    %v181 = vpop.f32.mrf.mxu0
    %v182 = vadd.f32 %v132, %v181
    %183 = vmatmul.f32.gmra.mxu0 %v138
    %v184 = vpop.f32.mrf.mxu0
    %v185 = vadd.f32 %v132, %v184
    %186 = vmatmul.f32.gmra.mxu0 %v141
    %v187 = vpop.f32.mrf.mxu0
    %v188 = vadd.f32 %v132, %v187
    %189 = vmatmul.f32.gmra.mxu0 %v144
    %v190 = vpop.f32.mrf.mxu0
    %v191 = vadd.f32 %v132, %v190
    %192 = vmatmul.f32.gmra.mxu0 %v147
    %v193 = vpop.f32.mrf.mxu0
    %v194 = vadd.f32 %v132, %v193
    %195 = vmatmul.f32.gmra.mxu0 %v150
    %v196 = vpop.f32.mrf.mxu0
    %v197 = vadd.f32 %v132, %v196
    %198 = vmatmul.f32.gmra.mxu0 %v153
    %v199 = vpop.f32.mrf.mxu0
    %v200 = vadd.f32 %v132, %v199
    %201 = vmatmul.f32.gmra.mxu0 %v156
    %v202 = vpop.f32.mrf.mxu0
    %v203 = vadd.f32 %v132, %v202
    %204 = vmatmul.f32.gmra.mxu0 %v159
    %v205 = vpop.f32.mrf.mxu0
    %v206 = vadd.f32 %v132, %v205
    %207 = vdwg.mxu0
    %v208 = vmax.f32 %v182, 0.0
    %v209 = vmax.f32 %v185, 0.0
    %v210 = vmax.f32 %v188, 0.0
    %v211 = vmax.f32 %v191, 0.0
    %v212 = vmax.f32 %v194, 0.0
    %v213 = vmax.f32 %v197, 0.0
    %v214 = vmax.f32 %v200, 0.0
    %v215 = vmax.f32 %v203, 0.0
    %v216 = vmax.f32 %v206, 0.0
    %v217 = vperm.slane %v44, 0
    %v218 = vadd.f32 %v208, %v217
    %v219 = vadd.f32 %v209, %v217
    %v220 = vadd.f32 %v210, %v217
    %v221 = vadd.f32 %v211, %v217
    %v222 = vadd.f32 %v212, %v217
    %v223 = vadd.f32 %v213, %v217
    %v224 = vadd.f32 %v214, %v217
    %v225 = vadd.f32 %v215, %v217
    %v226 = vadd.f32 %v216, %v217
    %s227 = scalar_lea.vmem [#allocation2], 64
    %v228 = vld [vmem:[%s227] sm:$0xff]
    %v229 = vld [vmem:[%s227 + $0x8] sm:$0xff]
    %v230 = vld [vmem:[%s227 + $0x10] sm:$0xff]
    %v231 = vld [vmem:[%s227 + $0x18] sm:$0xff]
    %v232 = vld [vmem:[%s227 + $0x20] sm:$0xff]
    %v233 = vld [vmem:[%s227 + $0x28] sm:$0xff]
    %v234 = vld [vmem:[%s227 + $0x30] sm:$0xff]
    %v235 = vld [vmem:[%s227 + $0x38] sm:$0xff]
    %vm236 = vcmask 523264
    %v238 = vsel %vm236, %v218, 0
    %v241 = vsel %vm236, %v219, 0
    %v244 = vsel %vm236, %v220, 0
    %v247 = vsel %vm236, %v221, 0
    %v250 = vsel %vm236, %v222, 0
    %v253 = vsel %vm236, %v223, 0
    %v256 = vsel %vm236, %v224, 0
    %v259 = vsel %vm236, %v225, 0
    %v262 = vsel %vm236, %v226, 0
    %264 = vmatpush.msra.mxu0 0.0
    %265 = vmatpush.msra.mxu0 0.0
    %266 = vmatpush.msra.mxu0 0.0
    %267 = vmatpush.msra.mxu0 0.0
    %268 = vmatpush.msra.mxu0 0.0
    %269 = vmatpush.msra.mxu0 0.0
    %270 = vmatpush.msra.mxu0 0.0
    %271 = vmatpush.msra.mxu0 0.0
    %272 = vmatpush.msra.mxu0 %v235
    %273 = vmatpush.msra.mxu0 %v234
    %274 = vmatpush.msra.mxu0 %v233
    %275 = vmatpush.msra.mxu0 %v232
    %276 = vmatpush.msra.mxu0 %v231
    %277 = vmatpush.msra.mxu0 %v230
    %278 = vmatpush.msra.mxu0 %v229
    %279 = vmatpush.msra.mxu0 %v228
    %280 = vmatmul.f32.gmra.mxu0 %v238
    %v281 = vpop.f32.mrf.mxu0
    %v282 = vadd.f32 0.0, %v281
    %283 = vmatmul.f32.gmra.mxu0 %v241
    %v284 = vpop.f32.mrf.mxu0
    %v285 = vadd.f32 0.0, %v284
    %286 = vmatmul.f32.gmra.mxu0 %v244
    %v287 = vpop.f32.mrf.mxu0
    %v288 = vadd.f32 0.0, %v287
    %289 = vmatmul.f32.gmra.mxu0 %v247
    %v290 = vpop.f32.mrf.mxu0
    %v291 = vadd.f32 0.0, %v290
    %292 = vmatmul.f32.gmra.mxu0 %v250
    %v293 = vpop.f32.mrf.mxu0
    %v294 = vadd.f32 0.0, %v293
    %295 = vmatmul.f32.gmra.mxu0 %v253
    %v296 = vpop.f32.mrf.mxu0
    %v297 = vadd.f32 0.0, %v296
    %298 = vmatmul.f32.gmra.mxu0 %v256
    %v299 = vpop.f32.mrf.mxu0
    %v300 = vadd.f32 0.0, %v299
    %301 = vmatmul.f32.gmra.mxu0 %v259
    %v302 = vpop.f32.mrf.mxu0
    %v303 = vadd.f32 0.0, %v302
    %304 = vmatmul.f32.gmra.mxu0 %v262
    %v305 = vpop.f32.mrf.mxu0
    %v306 = vadd.f32 0.0, %v305
    %307 = vdwg.mxu0
    %v308 = vperm.slane %v43, 1
    %v310 = vsel %vm84, %v306, 0
    %312 = vmatpush.msra.mxu0 0.0
    %313 = vmatpush.msra.mxu0 0.0
    %314 = vmatpush.msra.mxu0 0.0
    %315 = vmatpush.msra.mxu0 0.0
    %316 = vmatpush.msra.mxu0 0.0
    %317 = vmatpush.msra.mxu0 0.0
    %318 = vmatpush.msra.mxu0 0.0
    %319 = vmatpush.msra.mxu0 %v310
    %320 = vmatpush.msra.mxu0 %v303
    %321 = vmatpush.msra.mxu0 %v300
    %322 = vmatpush.msra.mxu0 %v297
    %323 = vmatpush.msra.mxu0 %v294
    %324 = vmatpush.msra.mxu0 %v291
    %325 = vmatpush.msra.mxu0 %v288
    %326 = vmatpush.msra.mxu0 %v285
    %327 = vmatpush.msra.mxu0 %v282
    %328 = vmatmul.f32.gmra.mxu0 %v135
    %v329 = vpop.f32.mrf.mxu0
    %v330 = vadd.f32 %v308, %v329
    %331 = vmatmul.f32.gmra.mxu0 %v138
    %v332 = vpop.f32.mrf.mxu0
    %v333 = vadd.f32 %v308, %v332
    %334 = vmatmul.f32.gmra.mxu0 %v141
    %v335 = vpop.f32.mrf.mxu0
    %v336 = vadd.f32 %v308, %v335
    %337 = vmatmul.f32.gmra.mxu0 %v144
    %v338 = vpop.f32.mrf.mxu0
    %v339 = vadd.f32 %v308, %v338
    %340 = vmatmul.f32.gmra.mxu0 %v147
    %v341 = vpop.f32.mrf.mxu0
    %v342 = vadd.f32 %v308, %v341
    %343 = vmatmul.f32.gmra.mxu0 %v150
    %v344 = vpop.f32.mrf.mxu0
    %v345 = vadd.f32 %v308, %v344
    %346 = vmatmul.f32.gmra.mxu0 %v153
    %v347 = vpop.f32.mrf.mxu0
    %v348 = vadd.f32 %v308, %v347
    %349 = vmatmul.f32.gmra.mxu0 %v156
    %v350 = vpop.f32.mrf.mxu0
    %v351 = vadd.f32 %v308, %v350
    %352 = vmatmul.f32.gmra.mxu0 %v159
    %v353 = vpop.f32.mrf.mxu0
    %v354 = vadd.f32 %v308, %v353
    %355 = vdwg.mxu0
    %v356 = vmax.f32 %v330, 0.0
    %v357 = vmax.f32 %v333, 0.0
    %v358 = vmax.f32 %v336, 0.0
    %v359 = vmax.f32 %v339, 0.0
    %v360 = vmax.f32 %v342, 0.0
    %v361 = vmax.f32 %v345, 0.0
    %v362 = vmax.f32 %v348, 0.0
    %v363 = vmax.f32 %v351, 0.0
    %v364 = vmax.f32 %v354, 0.0
    %v365 = vperm.slane %v44, 1
    %v366 = vadd.f32 %v356, %v365
    %v367 = vadd.f32 %v357, %v365
    %v368 = vadd.f32 %v358, %v365
    %v369 = vadd.f32 %v359, %v365
    %v370 = vadd.f32 %v360, %v365
    %v371 = vadd.f32 %v361, %v365
    %v372 = vadd.f32 %v362, %v365
    %v373 = vadd.f32 %v363, %v365
    %v374 = vadd.f32 %v364, %v365
    %v375 = vadd.f32 %v366, %v218
    %v376 = vadd.f32 %v367, %v219
    %v377 = vadd.f32 %v368, %v220
    %v378 = vadd.f32 %v369, %v221
    %v379 = vadd.f32 %v370, %v222
    %v380 = vadd.f32 %v371, %v223
    %v381 = vadd.f32 %v372, %v224
    %v382 = vadd.f32 %v373, %v225
    %v383 = vadd.f32 %v374, %v226
    %s384 = scalar_lea.vmem [#allocation2], 128
    %v385 = vld [vmem:[%s384] sm:$0xff]
    %v386 = vld [vmem:[%s384 + $0x8] sm:$0xff]
    %v387 = vld [vmem:[%s384 + $0x10] sm:$0xff]
    %v388 = vld [vmem:[%s384 + $0x18] sm:$0xff]
    %v389 = vld [vmem:[%s384 + $0x20] sm:$0xff]
    %v390 = vld [vmem:[%s384 + $0x28] sm:$0xff]
    %v391 = vld [vmem:[%s384 + $0x30] sm:$0xff]
    %v392 = vld [vmem:[%s384 + $0x38] sm:$0xff]
    %v394 = vsel %vm236, %v375, 0
    %v397 = vsel %vm236, %v376, 0
    %v400 = vsel %vm236, %v377, 0
    %v403 = vsel %vm236, %v378, 0
    %v406 = vsel %vm236, %v379, 0
    %v409 = vsel %vm236, %v380, 0
    %v412 = vsel %vm236, %v381, 0
    %v415 = vsel %vm236, %v382, 0
    %v418 = vsel %vm236, %v383, 0
    %420 = vmatpush.msra.mxu0 0.0
    %421 = vmatpush.msra.mxu0 0.0
    %422 = vmatpush.msra.mxu0 0.0
    %423 = vmatpush.msra.mxu0 0.0
    %424 = vmatpush.msra.mxu0 0.0
    %425 = vmatpush.msra.mxu0 0.0
    %426 = vmatpush.msra.mxu0 0.0
    %427 = vmatpush.msra.mxu0 0.0
    %428 = vmatpush.msra.mxu0 %v392
    %429 = vmatpush.msra.mxu0 %v391
    %430 = vmatpush.msra.mxu0 %v390
    %431 = vmatpush.msra.mxu0 %v389
    %432 = vmatpush.msra.mxu0 %v388
    %433 = vmatpush.msra.mxu0 %v387
    %434 = vmatpush.msra.mxu0 %v386
    %435 = vmatpush.msra.mxu0 %v385
    %436 = vmatmul.f32.gmra.mxu0 %v394
    %v437 = vpop.f32.mrf.mxu0
    %v438 = vadd.f32 0.0, %v437
    %439 = vmatmul.f32.gmra.mxu0 %v397
    %v440 = vpop.f32.mrf.mxu0
    %v441 = vadd.f32 0.0, %v440
    %442 = vmatmul.f32.gmra.mxu0 %v400
    %v443 = vpop.f32.mrf.mxu0
    %v444 = vadd.f32 0.0, %v443
    %445 = vmatmul.f32.gmra.mxu0 %v403
    %v446 = vpop.f32.mrf.mxu0
    %v447 = vadd.f32 0.0, %v446
    %448 = vmatmul.f32.gmra.mxu0 %v406
    %v449 = vpop.f32.mrf.mxu0
    %v450 = vadd.f32 0.0, %v449
    %451 = vmatmul.f32.gmra.mxu0 %v409
    %v452 = vpop.f32.mrf.mxu0
    %v453 = vadd.f32 0.0, %v452
    %454 = vmatmul.f32.gmra.mxu0 %v412
    %v455 = vpop.f32.mrf.mxu0
    %v456 = vadd.f32 0.0, %v455
    %457 = vmatmul.f32.gmra.mxu0 %v415
    %v458 = vpop.f32.mrf.mxu0
    %v459 = vadd.f32 0.0, %v458
    %460 = vmatmul.f32.gmra.mxu0 %v418
    %v461 = vpop.f32.mrf.mxu0
    %v462 = vadd.f32 0.0, %v461
    %463 = vdwg.mxu0
    %v464 = vperm.slane %v43, 2
    %v466 = vsel %vm84, %v462, 0
    %468 = vmatpush.msra.mxu0 0.0
    %469 = vmatpush.msra.mxu0 0.0
    %470 = vmatpush.msra.mxu0 0.0
    %471 = vmatpush.msra.mxu0 0.0
    %472 = vmatpush.msra.mxu0 0.0
    %473 = vmatpush.msra.mxu0 0.0
    %474 = vmatpush.msra.mxu0 0.0
    %475 = vmatpush.msra.mxu0 %v466
    %476 = vmatpush.msra.mxu0 %v459
    %477 = vmatpush.msra.mxu0 %v456
    %478 = vmatpush.msra.mxu0 %v453
    %479 = vmatpush.msra.mxu0 %v450
    %480 = vmatpush.msra.mxu0 %v447
    %481 = vmatpush.msra.mxu0 %v444
    %482 = vmatpush.msra.mxu0 %v441
    %483 = vmatpush.msra.mxu0 %v438
    %484 = vmatmul.f32.gmra.mxu0 %v135
    %v485 = vpop.f32.mrf.mxu0
    %v486 = vadd.f32 %v464, %v485
    %487 = vmatmul.f32.gmra.mxu0 %v138
    %v488 = vpop.f32.mrf.mxu0
    %v489 = vadd.f32 %v464, %v488
    %490 = vmatmul.f32.gmra.mxu0 %v141
    %v491 = vpop.f32.mrf.mxu0
    %v492 = vadd.f32 %v464, %v491
    %493 = vmatmul.f32.gmra.mxu0 %v144
    %v494 = vpop.f32.mrf.mxu0
    %v495 = vadd.f32 %v464, %v494
    %496 = vmatmul.f32.gmra.mxu0 %v147
    %v497 = vpop.f32.mrf.mxu0
    %v498 = vadd.f32 %v464, %v497
    %499 = vmatmul.f32.gmra.mxu0 %v150
    %v500 = vpop.f32.mrf.mxu0
    %v501 = vadd.f32 %v464, %v500
    %502 = vmatmul.f32.gmra.mxu0 %v153
    %v503 = vpop.f32.mrf.mxu0
    %v504 = vadd.f32 %v464, %v503
    %505 = vmatmul.f32.gmra.mxu0 %v156
    %v506 = vpop.f32.mrf.mxu0
    %v507 = vadd.f32 %v464, %v506
    %508 = vmatmul.f32.gmra.mxu0 %v159
    %v509 = vpop.f32.mrf.mxu0
    %v510 = vadd.f32 %v464, %v509
    %511 = vdwg.mxu0
    %v512 = vmax.f32 %v486, 0.0
    %v513 = vmax.f32 %v489, 0.0
    %v514 = vmax.f32 %v492, 0.0
    %v515 = vmax.f32 %v495, 0.0
    %v516 = vmax.f32 %v498, 0.0
    %v517 = vmax.f32 %v501, 0.0
    %v518 = vmax.f32 %v504, 0.0
    %v519 = vmax.f32 %v507, 0.0
    %v520 = vmax.f32 %v510, 0.0
    %v521 = vperm.slane %v44, 2
    %v522 = vadd.f32 %v512, %v521
    %v523 = vadd.f32 %v513, %v521
    %v524 = vadd.f32 %v514, %v521
    %v525 = vadd.f32 %v515, %v521
    %v526 = vadd.f32 %v516, %v521
    %v527 = vadd.f32 %v517, %v521
    %v528 = vadd.f32 %v518, %v521
    %v529 = vadd.f32 %v519, %v521
    %v530 = vadd.f32 %v520, %v521
    %v531 = vadd.f32 %v522, %v375
    %v532 = vadd.f32 %v523, %v376
    %v533 = vadd.f32 %v524, %v377
    %v534 = vadd.f32 %v525, %v378
    %v535 = vadd.f32 %v526, %v379
    %v536 = vadd.f32 %v527, %v380
    %v537 = vadd.f32 %v528, %v381
    %v538 = vadd.f32 %v529, %v382
    %v539 = vadd.f32 %v530, %v383
    %s540 = scalar_lea.vmem [#allocation2], 192
    %v541 = vld [vmem:[%s540] sm:$0xff]
    %v542 = vld [vmem:[%s540 + $0x8] sm:$0xff]
    %v543 = vld [vmem:[%s540 + $0x10] sm:$0xff]
    %v544 = vld [vmem:[%s540 + $0x18] sm:$0xff]
    %v545 = vld [vmem:[%s540 + $0x20] sm:$0xff]
    %v546 = vld [vmem:[%s540 + $0x28] sm:$0xff]
    %v547 = vld [vmem:[%s540 + $0x30] sm:$0xff]
    %v548 = vld [vmem:[%s540 + $0x38] sm:$0xff]
    %v550 = vsel %vm236, %v531, 0
    %v553 = vsel %vm236, %v532, 0
    %v556 = vsel %vm236, %v533, 0
    %v559 = vsel %vm236, %v534, 0
    %v562 = vsel %vm236, %v535, 0
    %v565 = vsel %vm236, %v536, 0
    %v568 = vsel %vm236, %v537, 0
    %v571 = vsel %vm236, %v538, 0
    %v574 = vsel %vm236, %v539, 0
    %576 = vmatpush.msra.mxu0 0.0
    %577 = vmatpush.msra.mxu0 0.0
    %578 = vmatpush.msra.mxu0 0.0
    %579 = vmatpush.msra.mxu0 0.0
    %580 = vmatpush.msra.mxu0 0.0
    %581 = vmatpush.msra.mxu0 0.0
    %582 = vmatpush.msra.mxu0 0.0
    %583 = vmatpush.msra.mxu0 0.0
    %584 = vmatpush.msra.mxu0 %v548
    %585 = vmatpush.msra.mxu0 %v547
    %586 = vmatpush.msra.mxu0 %v546
    %587 = vmatpush.msra.mxu0 %v545
    %588 = vmatpush.msra.mxu0 %v544
    %589 = vmatpush.msra.mxu0 %v543
    %590 = vmatpush.msra.mxu0 %v542
    %591 = vmatpush.msra.mxu0 %v541
    %592 = vmatmul.f32.gmra.mxu0 %v550
    %v593 = vpop.f32.mrf.mxu0
    %v594 = vadd.f32 0.0, %v593
    %595 = vmatmul.f32.gmra.mxu0 %v553
    %v596 = vpop.f32.mrf.mxu0
    %v597 = vadd.f32 0.0, %v596
    %598 = vmatmul.f32.gmra.mxu0 %v556
    %v599 = vpop.f32.mrf.mxu0
    %v600 = vadd.f32 0.0, %v599
    %601 = vmatmul.f32.gmra.mxu0 %v559
    %v602 = vpop.f32.mrf.mxu0
    %v603 = vadd.f32 0.0, %v602
    %604 = vmatmul.f32.gmra.mxu0 %v562
    %v605 = vpop.f32.mrf.mxu0
    %v606 = vadd.f32 0.0, %v605
    %607 = vmatmul.f32.gmra.mxu0 %v565
    %v608 = vpop.f32.mrf.mxu0
    %v609 = vadd.f32 0.0, %v608
    %610 = vmatmul.f32.gmra.mxu0 %v568
    %v611 = vpop.f32.mrf.mxu0
    %v612 = vadd.f32 0.0, %v611
    %613 = vmatmul.f32.gmra.mxu0 %v571
    %v614 = vpop.f32.mrf.mxu0
    %v615 = vadd.f32 0.0, %v614
    %616 = vmatmul.f32.gmra.mxu0 %v574
    %v617 = vpop.f32.mrf.mxu0
    %v618 = vadd.f32 0.0, %v617
    %619 = vdwg.mxu0
    %v620 = vperm.slane %v43, 3
    %v622 = vsel %vm84, %v618, 0
    %624 = vmatpush.msra.mxu0 0.0
    %625 = vmatpush.msra.mxu0 0.0
    %626 = vmatpush.msra.mxu0 0.0
    %627 = vmatpush.msra.mxu0 0.0
    %628 = vmatpush.msra.mxu0 0.0
    %629 = vmatpush.msra.mxu0 0.0
    %630 = vmatpush.msra.mxu0 0.0
    %631 = vmatpush.msra.mxu0 %v622
    %632 = vmatpush.msra.mxu0 %v615
    %633 = vmatpush.msra.mxu0 %v612
    %634 = vmatpush.msra.mxu0 %v609
    %635 = vmatpush.msra.mxu0 %v606
    %636 = vmatpush.msra.mxu0 %v603
    %637 = vmatpush.msra.mxu0 %v600
    %638 = vmatpush.msra.mxu0 %v597
    %639 = vmatpush.msra.mxu0 %v594
    %640 = vmatmul.f32.gmra.mxu0 %v135
    %v641 = vpop.f32.mrf.mxu0
    %v642 = vadd.f32 %v620, %v641
    %643 = vmatmul.f32.gmra.mxu0 %v138
    %v644 = vpop.f32.mrf.mxu0
    %v645 = vadd.f32 %v620, %v644
    %646 = vmatmul.f32.gmra.mxu0 %v141
    %v647 = vpop.f32.mrf.mxu0
    %v648 = vadd.f32 %v620, %v647
    %649 = vmatmul.f32.gmra.mxu0 %v144
    %v650 = vpop.f32.mrf.mxu0
    %v651 = vadd.f32 %v620, %v650
    %652 = vmatmul.f32.gmra.mxu0 %v147
    %v653 = vpop.f32.mrf.mxu0
    %v654 = vadd.f32 %v620, %v653
    %655 = vmatmul.f32.gmra.mxu0 %v150
    %v656 = vpop.f32.mrf.mxu0
    %v657 = vadd.f32 %v620, %v656
    %658 = vmatmul.f32.gmra.mxu0 %v153
    %v659 = vpop.f32.mrf.mxu0
    %v660 = vadd.f32 %v620, %v659
    %661 = vmatmul.f32.gmra.mxu0 %v156
    %v662 = vpop.f32.mrf.mxu0
    %v663 = vadd.f32 %v620, %v662
    %664 = vmatmul.f32.gmra.mxu0 %v159
    %v665 = vpop.f32.mrf.mxu0
    %v666 = vadd.f32 %v620, %v665
    %667 = vdwg.mxu0
    %v668 = vmax.f32 %v642, 0.0
    %v669 = vmax.f32 %v645, 0.0
    %v670 = vmax.f32 %v648, 0.0
    %v671 = vmax.f32 %v651, 0.0
    %v672 = vmax.f32 %v654, 0.0
    %v673 = vmax.f32 %v657, 0.0
    %v674 = vmax.f32 %v660, 0.0
    %v675 = vmax.f32 %v663, 0.0
    %v676 = vmax.f32 %v666, 0.0
    %v677 = vperm.slane %v44, 3
    %v678 = vadd.f32 %v668, %v677
    %v679 = vadd.f32 %v669, %v677
    %v680 = vadd.f32 %v670, %v677
    %v681 = vadd.f32 %v671, %v677
    %v682 = vadd.f32 %v672, %v677
    %v683 = vadd.f32 %v673, %v677
    %v684 = vadd.f32 %v674, %v677
    %v685 = vadd.f32 %v675, %v677
    %v686 = vadd.f32 %v676, %v677
    %v687 = vadd.f32 %v678, %v531
    %v688 = vadd.f32 %v679, %v532
    %v689 = vadd.f32 %v680, %v533
    %v690 = vadd.f32 %v681, %v534
    %v691 = vadd.f32 %v682, %v535
    %v692 = vadd.f32 %v683, %v536
    %v693 = vadd.f32 %v684, %v537
    %v694 = vadd.f32 %v685, %v538
    %v695 = vadd.f32 %v686, %v539
    %s696 = scalar_lea.vmem [#allocation2], 256
    %v697 = vld [vmem:[%s696] sm:$0xff]
    %v698 = vld [vmem:[%s696 + $0x8] sm:$0xff]
    %v699 = vld [vmem:[%s696 + $0x10] sm:$0xff]
    %v700 = vld [vmem:[%s696 + $0x18] sm:$0xff]
    %v701 = vld [vmem:[%s696 + $0x20] sm:$0xff]
    %v702 = vld [vmem:[%s696 + $0x28] sm:$0xff]
    %v703 = vld [vmem:[%s696 + $0x30] sm:$0xff]
    %v704 = vld [vmem:[%s696 + $0x38] sm:$0xff]
    %v706 = vsel %vm236, %v687, 0
    %v709 = vsel %vm236, %v688, 0
    %v712 = vsel %vm236, %v689, 0
    %v715 = vsel %vm236, %v690, 0
    %v718 = vsel %vm236, %v691, 0
    %v721 = vsel %vm236, %v692, 0
    %v724 = vsel %vm236, %v693, 0
    %v727 = vsel %vm236, %v694, 0
    %v730 = vsel %vm236, %v695, 0
    %732 = vmatpush.msra.mxu0 0.0
    %733 = vmatpush.msra.mxu0 0.0
    %734 = vmatpush.msra.mxu0 0.0
    %735 = vmatpush.msra.mxu0 0.0
    %736 = vmatpush.msra.mxu0 0.0
    %737 = vmatpush.msra.mxu0 0.0
    %738 = vmatpush.msra.mxu0 0.0
    %739 = vmatpush.msra.mxu0 0.0
    %740 = vmatpush.msra.mxu0 %v704
    %741 = vmatpush.msra.mxu0 %v703
    %742 = vmatpush.msra.mxu0 %v702
    %743 = vmatpush.msra.mxu0 %v701
    %744 = vmatpush.msra.mxu0 %v700
    %745 = vmatpush.msra.mxu0 %v699
    %746 = vmatpush.msra.mxu0 %v698
    %747 = vmatpush.msra.mxu0 %v697
    %748 = vmatmul.f32.gmra.mxu0 %v706
    %v749 = vpop.f32.mrf.mxu0
    %v750 = vadd.f32 0.0, %v749
    %751 = vmatmul.f32.gmra.mxu0 %v709
    %v752 = vpop.f32.mrf.mxu0
    %v753 = vadd.f32 0.0, %v752
    %754 = vmatmul.f32.gmra.mxu0 %v712
    %v755 = vpop.f32.mrf.mxu0
    %v756 = vadd.f32 0.0, %v755
    %757 = vmatmul.f32.gmra.mxu0 %v715
    %v758 = vpop.f32.mrf.mxu0
    %v759 = vadd.f32 0.0, %v758
    %760 = vmatmul.f32.gmra.mxu0 %v718
    %v761 = vpop.f32.mrf.mxu0
    %v762 = vadd.f32 0.0, %v761
    %763 = vmatmul.f32.gmra.mxu0 %v721
    %v764 = vpop.f32.mrf.mxu0
    %v765 = vadd.f32 0.0, %v764
    %766 = vmatmul.f32.gmra.mxu0 %v724
    %v767 = vpop.f32.mrf.mxu0
    %v768 = vadd.f32 0.0, %v767
    %769 = vmatmul.f32.gmra.mxu0 %v727
    %v770 = vpop.f32.mrf.mxu0
    %v771 = vadd.f32 0.0, %v770
    %772 = vmatmul.f32.gmra.mxu0 %v730
    %v773 = vpop.f32.mrf.mxu0
    %v774 = vadd.f32 0.0, %v773
    %775 = vdwg.mxu0
    %v776 = vperm.slane %v43, 4
    %v778 = vsel %vm84, %v774, 0
    %780 = vmatpush.msra.mxu0 0.0
    %781 = vmatpush.msra.mxu0 0.0
    %782 = vmatpush.msra.mxu0 0.0
    %783 = vmatpush.msra.mxu0 0.0
    %784 = vmatpush.msra.mxu0 0.0
    %785 = vmatpush.msra.mxu0 0.0
    %786 = vmatpush.msra.mxu0 0.0
    %787 = vmatpush.msra.mxu0 %v778
    %788 = vmatpush.msra.mxu0 %v771
    %789 = vmatpush.msra.mxu0 %v768
    %790 = vmatpush.msra.mxu0 %v765
    %791 = vmatpush.msra.mxu0 %v762
    %792 = vmatpush.msra.mxu0 %v759
    %793 = vmatpush.msra.mxu0 %v756
    %794 = vmatpush.msra.mxu0 %v753
    %795 = vmatpush.msra.mxu0 %v750
    %796 = vmatmul.f32.gmra.mxu0 %v135
    %v797 = vpop.f32.mrf.mxu0
    %v798 = vadd.f32 %v776, %v797
    %799 = vmatmul.f32.gmra.mxu0 %v138
    %v800 = vpop.f32.mrf.mxu0
    %v801 = vadd.f32 %v776, %v800
    %802 = vmatmul.f32.gmra.mxu0 %v141
    %v803 = vpop.f32.mrf.mxu0
    %v804 = vadd.f32 %v776, %v803
    %805 = vmatmul.f32.gmra.mxu0 %v144
    %v806 = vpop.f32.mrf.mxu0
    %v807 = vadd.f32 %v776, %v806
    %808 = vmatmul.f32.gmra.mxu0 %v147
    %v809 = vpop.f32.mrf.mxu0
    %v810 = vadd.f32 %v776, %v809
    %811 = vmatmul.f32.gmra.mxu0 %v150
    %v812 = vpop.f32.mrf.mxu0
    %v813 = vadd.f32 %v776, %v812
    %814 = vmatmul.f32.gmra.mxu0 %v153
    %v815 = vpop.f32.mrf.mxu0
    %v816 = vadd.f32 %v776, %v815
    %817 = vmatmul.f32.gmra.mxu0 %v156
    %v818 = vpop.f32.mrf.mxu0
    %v819 = vadd.f32 %v776, %v818
    %820 = vmatmul.f32.gmra.mxu0 %v159
    %v821 = vpop.f32.mrf.mxu0
    %v822 = vadd.f32 %v776, %v821
    %823 = vdwg.mxu0
    %v824 = vmax.f32 %v798, 0.0
    %v825 = vmax.f32 %v801, 0.0
    %v826 = vmax.f32 %v804, 0.0
    %v827 = vmax.f32 %v807, 0.0
    %v828 = vmax.f32 %v810, 0.0
    %v829 = vmax.f32 %v813, 0.0
    %v830 = vmax.f32 %v816, 0.0
    %v831 = vmax.f32 %v819, 0.0
    %v832 = vmax.f32 %v822, 0.0
    %v833 = vperm.slane %v44, 4
    %v834 = vadd.f32 %v824, %v833
    %v835 = vadd.f32 %v825, %v833
    %v836 = vadd.f32 %v826, %v833
    %v837 = vadd.f32 %v827, %v833
    %v838 = vadd.f32 %v828, %v833
    %v839 = vadd.f32 %v829, %v833
    %v840 = vadd.f32 %v830, %v833
    %v841 = vadd.f32 %v831, %v833
    %v842 = vadd.f32 %v832, %v833
    %v843 = vadd.f32 %v834, %v687
    %v844 = vadd.f32 %v835, %v688
    %v845 = vadd.f32 %v836, %v689
    %v846 = vadd.f32 %v837, %v690
    %v847 = vadd.f32 %v838, %v691
    %v848 = vadd.f32 %v839, %v692
    %v849 = vadd.f32 %v840, %v693
    %v850 = vadd.f32 %v841, %v694
    %v851 = vadd.f32 %v842, %v695
    %s852 = scalar_lea.vmem [#allocation2], 320
    %v853 = vld [vmem:[%s852] sm:$0xff]
    %v854 = vld [vmem:[%s852 + $0x8] sm:$0xff]
    %v855 = vld [vmem:[%s852 + $0x10] sm:$0xff]
    %v856 = vld [vmem:[%s852 + $0x18] sm:$0xff]
    %v857 = vld [vmem:[%s852 + $0x20] sm:$0xff]
    %v858 = vld [vmem:[%s852 + $0x28] sm:$0xff]
    %v859 = vld [vmem:[%s852 + $0x30] sm:$0xff]
    %v860 = vld [vmem:[%s852 + $0x38] sm:$0xff]
    %v862 = vsel %vm236, %v843, 0
    %v865 = vsel %vm236, %v844, 0
    %v868 = vsel %vm236, %v845, 0
    %v871 = vsel %vm236, %v846, 0
    %v874 = vsel %vm236, %v847, 0
    %v877 = vsel %vm236, %v848, 0
    %v880 = vsel %vm236, %v849, 0
    %v883 = vsel %vm236, %v850, 0
    %v886 = vsel %vm236, %v851, 0
    %888 = vmatpush.msra.mxu0 0.0
    %889 = vmatpush.msra.mxu0 0.0
    %890 = vmatpush.msra.mxu0 0.0
    %891 = vmatpush.msra.mxu0 0.0
    %892 = vmatpush.msra.mxu0 0.0
    %893 = vmatpush.msra.mxu0 0.0
    %894 = vmatpush.msra.mxu0 0.0
    %895 = vmatpush.msra.mxu0 0.0
    %896 = vmatpush.msra.mxu0 %v860
    %897 = vmatpush.msra.mxu0 %v859
    %898 = vmatpush.msra.mxu0 %v858
    %899 = vmatpush.msra.mxu0 %v857
    %900 = vmatpush.msra.mxu0 %v856
    %901 = vmatpush.msra.mxu0 %v855
    %902 = vmatpush.msra.mxu0 %v854
    %903 = vmatpush.msra.mxu0 %v853
    %904 = vmatmul.f32.gmra.mxu0 %v862
    %v905 = vpop.f32.mrf.mxu0
    %v906 = vadd.f32 0.0, %v905
    %907 = vmatmul.f32.gmra.mxu0 %v865
    %v908 = vpop.f32.mrf.mxu0
    %v909 = vadd.f32 0.0, %v908
    %910 = vmatmul.f32.gmra.mxu0 %v868
    %v911 = vpop.f32.mrf.mxu0
    %v912 = vadd.f32 0.0, %v911
    %913 = vmatmul.f32.gmra.mxu0 %v871
    %v914 = vpop.f32.mrf.mxu0
    %v915 = vadd.f32 0.0, %v914
    %916 = vmatmul.f32.gmra.mxu0 %v874
    %v917 = vpop.f32.mrf.mxu0
    %v918 = vadd.f32 0.0, %v917
    %919 = vmatmul.f32.gmra.mxu0 %v877
    %v920 = vpop.f32.mrf.mxu0
    %v921 = vadd.f32 0.0, %v920
    %922 = vmatmul.f32.gmra.mxu0 %v880
    %v923 = vpop.f32.mrf.mxu0
    %v924 = vadd.f32 0.0, %v923
    %925 = vmatmul.f32.gmra.mxu0 %v883
    %v926 = vpop.f32.mrf.mxu0
    %v927 = vadd.f32 0.0, %v926
    %928 = vmatmul.f32.gmra.mxu0 %v886
    %v929 = vpop.f32.mrf.mxu0
    %v930 = vadd.f32 0.0, %v929
    %931 = vdwg.mxu0
    %v932 = vperm.slane %v43, 5
    %v934 = vsel %vm84, %v930, 0
    %936 = vmatpush.msra.mxu0 0.0
    %937 = vmatpush.msra.mxu0 0.0
    %938 = vmatpush.msra.mxu0 0.0
    %939 = vmatpush.msra.mxu0 0.0
    %940 = vmatpush.msra.mxu0 0.0
    %941 = vmatpush.msra.mxu0 0.0
    %942 = vmatpush.msra.mxu0 0.0
    %943 = vmatpush.msra.mxu0 %v934
    %944 = vmatpush.msra.mxu0 %v927
    %945 = vmatpush.msra.mxu0 %v924
    %946 = vmatpush.msra.mxu0 %v921
    %947 = vmatpush.msra.mxu0 %v918
    %948 = vmatpush.msra.mxu0 %v915
    %949 = vmatpush.msra.mxu0 %v912
    %950 = vmatpush.msra.mxu0 %v909
    %951 = vmatpush.msra.mxu0 %v906
    %952 = vmatmul.f32.gmra.mxu0 %v135
    %v953 = vpop.f32.mrf.mxu0
    %v954 = vadd.f32 %v932, %v953
    %955 = vmatmul.f32.gmra.mxu0 %v138
    %v956 = vpop.f32.mrf.mxu0
    %v957 = vadd.f32 %v932, %v956
    %958 = vmatmul.f32.gmra.mxu0 %v141
    %v959 = vpop.f32.mrf.mxu0
    %v960 = vadd.f32 %v932, %v959
    %961 = vmatmul.f32.gmra.mxu0 %v144
    %v962 = vpop.f32.mrf.mxu0
    %v963 = vadd.f32 %v932, %v962
    %964 = vmatmul.f32.gmra.mxu0 %v147
    %v965 = vpop.f32.mrf.mxu0
    %v966 = vadd.f32 %v932, %v965
    %967 = vmatmul.f32.gmra.mxu0 %v150
    %v968 = vpop.f32.mrf.mxu0
    %v969 = vadd.f32 %v932, %v968
    %970 = vmatmul.f32.gmra.mxu0 %v153
    %v971 = vpop.f32.mrf.mxu0
    %v972 = vadd.f32 %v932, %v971
    %973 = vmatmul.f32.gmra.mxu0 %v156
    %v974 = vpop.f32.mrf.mxu0
    %v975 = vadd.f32 %v932, %v974
    %976 = vmatmul.f32.gmra.mxu0 %v159
    %v977 = vpop.f32.mrf.mxu0
    %v978 = vadd.f32 %v932, %v977
    %979 = vdwg.mxu0
    %v980 = vmax.f32 %v954, 0.0
    %v981 = vmax.f32 %v957, 0.0
    %v982 = vmax.f32 %v960, 0.0
    %v983 = vmax.f32 %v963, 0.0
    %v984 = vmax.f32 %v966, 0.0
    %v985 = vmax.f32 %v969, 0.0
    %v986 = vmax.f32 %v972, 0.0
    %v987 = vmax.f32 %v975, 0.0
    %v988 = vmax.f32 %v978, 0.0
    %v989 = vperm.slane %v44, 5
    %v990 = vadd.f32 %v980, %v989
    %v991 = vadd.f32 %v981, %v989
    %v992 = vadd.f32 %v982, %v989
    %v993 = vadd.f32 %v983, %v989
    %v994 = vadd.f32 %v984, %v989
    %v995 = vadd.f32 %v985, %v989
    %v996 = vadd.f32 %v986, %v989
    %v997 = vadd.f32 %v987, %v989
    %v998 = vadd.f32 %v988, %v989
    %v999 = vadd.f32 %v990, %v843
    %v1000 = vadd.f32 %v991, %v844
    %v1001 = vadd.f32 %v992, %v845
    %v1002 = vadd.f32 %v993, %v846
    %v1003 = vadd.f32 %v994, %v847
    %v1004 = vadd.f32 %v995, %v848
    %v1005 = vadd.f32 %v996, %v849
    %v1006 = vadd.f32 %v997, %v850
    %v1007 = vadd.f32 %v998, %v851
    %s1008 = scalar_lea.vmem [#allocation2], 384
    %v1009 = vld [vmem:[%s1008] sm:$0xff]
    %v1010 = vld [vmem:[%s1008 + $0x8] sm:$0xff]
    %v1011 = vld [vmem:[%s1008 + $0x10] sm:$0xff]
    %v1012 = vld [vmem:[%s1008 + $0x18] sm:$0xff]
    %v1013 = vld [vmem:[%s1008 + $0x20] sm:$0xff]
    %v1014 = vld [vmem:[%s1008 + $0x28] sm:$0xff]
    %v1015 = vld [vmem:[%s1008 + $0x30] sm:$0xff]
    %v1016 = vld [vmem:[%s1008 + $0x38] sm:$0xff]
    %v1018 = vsel %vm236, %v999, 0
    %v1021 = vsel %vm236, %v1000, 0
    %v1024 = vsel %vm236, %v1001, 0
    %v1027 = vsel %vm236, %v1002, 0
    %v1030 = vsel %vm236, %v1003, 0
    %v1033 = vsel %vm236, %v1004, 0
    %v1036 = vsel %vm236, %v1005, 0
    %v1039 = vsel %vm236, %v1006, 0
    %v1042 = vsel %vm236, %v1007, 0
    %1044 = vmatpush.msra.mxu0 0.0
    %1045 = vmatpush.msra.mxu0 0.0
    %1046 = vmatpush.msra.mxu0 0.0
    %1047 = vmatpush.msra.mxu0 0.0
    %1048 = vmatpush.msra.mxu0 0.0
    %1049 = vmatpush.msra.mxu0 0.0
    %1050 = vmatpush.msra.mxu0 0.0
    %1051 = vmatpush.msra.mxu0 0.0
    %1052 = vmatpush.msra.mxu0 %v1016
    %1053 = vmatpush.msra.mxu0 %v1015
    %1054 = vmatpush.msra.mxu0 %v1014
    %1055 = vmatpush.msra.mxu0 %v1013
    %1056 = vmatpush.msra.mxu0 %v1012
    %1057 = vmatpush.msra.mxu0 %v1011
    %1058 = vmatpush.msra.mxu0 %v1010
    %1059 = vmatpush.msra.mxu0 %v1009
    %1060 = vmatmul.f32.gmra.mxu0 %v1018
    %v1061 = vpop.f32.mrf.mxu0
    %v1062 = vadd.f32 0.0, %v1061
    %1063 = vmatmul.f32.gmra.mxu0 %v1021
    %v1064 = vpop.f32.mrf.mxu0
    %v1065 = vadd.f32 0.0, %v1064
    %1066 = vmatmul.f32.gmra.mxu0 %v1024
    %v1067 = vpop.f32.mrf.mxu0
    %v1068 = vadd.f32 0.0, %v1067
    %1069 = vmatmul.f32.gmra.mxu0 %v1027
    %v1070 = vpop.f32.mrf.mxu0
    %v1071 = vadd.f32 0.0, %v1070
    %1072 = vmatmul.f32.gmra.mxu0 %v1030
    %v1073 = vpop.f32.mrf.mxu0
    %v1074 = vadd.f32 0.0, %v1073
    %1075 = vmatmul.f32.gmra.mxu0 %v1033
    %v1076 = vpop.f32.mrf.mxu0
    %v1077 = vadd.f32 0.0, %v1076
    %1078 = vmatmul.f32.gmra.mxu0 %v1036
    %v1079 = vpop.f32.mrf.mxu0
    %v1080 = vadd.f32 0.0, %v1079
    %1081 = vmatmul.f32.gmra.mxu0 %v1039
    %v1082 = vpop.f32.mrf.mxu0
    %v1083 = vadd.f32 0.0, %v1082
    %1084 = vmatmul.f32.gmra.mxu0 %v1042
    %v1085 = vpop.f32.mrf.mxu0
    %v1086 = vadd.f32 0.0, %v1085
    %1087 = vdwg.mxu0
    %v1088 = vperm.slane %v43, 6
    %v1090 = vsel %vm84, %v1086, 0
    %1092 = vmatpush.msra.mxu0 0.0
    %1093 = vmatpush.msra.mxu0 0.0
    %1094 = vmatpush.msra.mxu0 0.0
    %1095 = vmatpush.msra.mxu0 0.0
    %1096 = vmatpush.msra.mxu0 0.0
    %1097 = vmatpush.msra.mxu0 0.0
    %1098 = vmatpush.msra.mxu0 0.0
    %1099 = vmatpush.msra.mxu0 %v1090
    %1100 = vmatpush.msra.mxu0 %v1083
    %1101 = vmatpush.msra.mxu0 %v1080
    %1102 = vmatpush.msra.mxu0 %v1077
    %1103 = vmatpush.msra.mxu0 %v1074
    %1104 = vmatpush.msra.mxu0 %v1071
    %1105 = vmatpush.msra.mxu0 %v1068
    %1106 = vmatpush.msra.mxu0 %v1065
    %1107 = vmatpush.msra.mxu0 %v1062
    %1108 = vmatmul.f32.gmra.mxu0 %v135
    %v1109 = vpop.f32.mrf.mxu0
    %v1110 = vadd.f32 %v1088, %v1109
    %1111 = vmatmul.f32.gmra.mxu0 %v138
    %v1112 = vpop.f32.mrf.mxu0
    %v1113 = vadd.f32 %v1088, %v1112
    %1114 = vmatmul.f32.gmra.mxu0 %v141
    %v1115 = vpop.f32.mrf.mxu0
    %v1116 = vadd.f32 %v1088, %v1115
    %1117 = vmatmul.f32.gmra.mxu0 %v144
    %v1118 = vpop.f32.mrf.mxu0
    %v1119 = vadd.f32 %v1088, %v1118
    %1120 = vmatmul.f32.gmra.mxu0 %v147
    %v1121 = vpop.f32.mrf.mxu0
    %v1122 = vadd.f32 %v1088, %v1121
    %1123 = vmatmul.f32.gmra.mxu0 %v150
    %v1124 = vpop.f32.mrf.mxu0
    %v1125 = vadd.f32 %v1088, %v1124
    %1126 = vmatmul.f32.gmra.mxu0 %v153
    %v1127 = vpop.f32.mrf.mxu0
    %v1128 = vadd.f32 %v1088, %v1127
    %1129 = vmatmul.f32.gmra.mxu0 %v156
    %v1130 = vpop.f32.mrf.mxu0
    %v1131 = vadd.f32 %v1088, %v1130
    %1132 = vmatmul.f32.gmra.mxu0 %v159
    %v1133 = vpop.f32.mrf.mxu0
    %v1134 = vadd.f32 %v1088, %v1133
    %1135 = vdwg.mxu0
    %v1136 = vmax.f32 %v1110, 0.0
    %v1137 = vmax.f32 %v1113, 0.0
    %v1138 = vmax.f32 %v1116, 0.0
    %v1139 = vmax.f32 %v1119, 0.0
    %v1140 = vmax.f32 %v1122, 0.0
    %v1141 = vmax.f32 %v1125, 0.0
    %v1142 = vmax.f32 %v1128, 0.0
    %v1143 = vmax.f32 %v1131, 0.0
    %v1144 = vmax.f32 %v1134, 0.0
    %v1145 = vperm.slane %v44, 6
    %v1146 = vadd.f32 %v1136, %v1145
    %v1147 = vadd.f32 %v1137, %v1145
    %v1148 = vadd.f32 %v1138, %v1145
    %v1149 = vadd.f32 %v1139, %v1145
    %v1150 = vadd.f32 %v1140, %v1145
    %v1151 = vadd.f32 %v1141, %v1145
    %v1152 = vadd.f32 %v1142, %v1145
    %v1153 = vadd.f32 %v1143, %v1145
    %v1154 = vadd.f32 %v1144, %v1145
    %v1155 = vadd.f32 %v1146, %v999
    %v1156 = vadd.f32 %v1147, %v1000
    %v1157 = vadd.f32 %v1148, %v1001
    %v1158 = vadd.f32 %v1149, %v1002
    %v1159 = vadd.f32 %v1150, %v1003
    %v1160 = vadd.f32 %v1151, %v1004
    %v1161 = vadd.f32 %v1152, %v1005
    %v1162 = vadd.f32 %v1153, %v1006
    %v1163 = vadd.f32 %v1154, %v1007
    %s1164 = scalar_lea.vmem [#allocation2], 448
    %v1165 = vld [vmem:[%s1164] sm:$0xff]
    %v1166 = vld [vmem:[%s1164 + $0x8] sm:$0xff]
    %v1167 = vld [vmem:[%s1164 + $0x10] sm:$0xff]
    %v1168 = vld [vmem:[%s1164 + $0x18] sm:$0xff]
    %v1169 = vld [vmem:[%s1164 + $0x20] sm:$0xff]
    %v1170 = vld [vmem:[%s1164 + $0x28] sm:$0xff]
    %v1171 = vld [vmem:[%s1164 + $0x30] sm:$0xff]
    %v1172 = vld [vmem:[%s1164 + $0x38] sm:$0xff]
    %v1174 = vsel %vm236, %v1155, 0
    %v1177 = vsel %vm236, %v1156, 0
    %v1180 = vsel %vm236, %v1157, 0
    %v1183 = vsel %vm236, %v1158, 0
    %v1186 = vsel %vm236, %v1159, 0
    %v1189 = vsel %vm236, %v1160, 0
    %v1192 = vsel %vm236, %v1161, 0
    %v1195 = vsel %vm236, %v1162, 0
    %v1198 = vsel %vm236, %v1163, 0
    %1200 = vmatpush.msra.mxu0 0.0
    %1201 = vmatpush.msra.mxu0 0.0
    %1202 = vmatpush.msra.mxu0 0.0
    %1203 = vmatpush.msra.mxu0 0.0
    %1204 = vmatpush.msra.mxu0 0.0
    %1205 = vmatpush.msra.mxu0 0.0
    %1206 = vmatpush.msra.mxu0 0.0
    %1207 = vmatpush.msra.mxu0 0.0
    %1208 = vmatpush.msra.mxu0 %v1172
    %1209 = vmatpush.msra.mxu0 %v1171
    %1210 = vmatpush.msra.mxu0 %v1170
    %1211 = vmatpush.msra.mxu0 %v1169
    %1212 = vmatpush.msra.mxu0 %v1168
    %1213 = vmatpush.msra.mxu0 %v1167
    %1214 = vmatpush.msra.mxu0 %v1166
    %1215 = vmatpush.msra.mxu0 %v1165
    %1216 = vmatmul.f32.gmra.mxu0 %v1174
    %v1217 = vpop.f32.mrf.mxu0
    %v1218 = vadd.f32 0.0, %v1217
    %1219 = vmatmul.f32.gmra.mxu0 %v1177
    %v1220 = vpop.f32.mrf.mxu0
    %v1221 = vadd.f32 0.0, %v1220
    %1222 = vmatmul.f32.gmra.mxu0 %v1180
    %v1223 = vpop.f32.mrf.mxu0
    %v1224 = vadd.f32 0.0, %v1223
    %1225 = vmatmul.f32.gmra.mxu0 %v1183
    %v1226 = vpop.f32.mrf.mxu0
    %v1227 = vadd.f32 0.0, %v1226
    %1228 = vmatmul.f32.gmra.mxu0 %v1186
    %v1229 = vpop.f32.mrf.mxu0
    %v1230 = vadd.f32 0.0, %v1229
    %1231 = vmatmul.f32.gmra.mxu0 %v1189
    %v1232 = vpop.f32.mrf.mxu0
    %v1233 = vadd.f32 0.0, %v1232
    %1234 = vmatmul.f32.gmra.mxu0 %v1192
    %v1235 = vpop.f32.mrf.mxu0
    %v1236 = vadd.f32 0.0, %v1235
    %1237 = vmatmul.f32.gmra.mxu0 %v1195
    %v1238 = vpop.f32.mrf.mxu0
    %v1239 = vadd.f32 0.0, %v1238
    %1240 = vmatmul.f32.gmra.mxu0 %v1198
    %v1241 = vpop.f32.mrf.mxu0
    %v1242 = vadd.f32 0.0, %v1241
    %1243 = vdwg.mxu0
    %v1244 = vperm.slane %v43, 7
    %v1246 = vsel %vm84, %v1242, 0
    %1248 = vmatpush.msra.mxu0 0.0
    %1249 = vmatpush.msra.mxu0 0.0
    %1250 = vmatpush.msra.mxu0 0.0
    %1251 = vmatpush.msra.mxu0 0.0
    %1252 = vmatpush.msra.mxu0 0.0
    %1253 = vmatpush.msra.mxu0 0.0
    %1254 = vmatpush.msra.mxu0 0.0
    %1255 = vmatpush.msra.mxu0 %v1246
    %1256 = vmatpush.msra.mxu0 %v1239
    %1257 = vmatpush.msra.mxu0 %v1236
    %1258 = vmatpush.msra.mxu0 %v1233
    %1259 = vmatpush.msra.mxu0 %v1230
    %1260 = vmatpush.msra.mxu0 %v1227
    %1261 = vmatpush.msra.mxu0 %v1224
    %1262 = vmatpush.msra.mxu0 %v1221
    %1263 = vmatpush.msra.mxu0 %v1218
    %1264 = vmatmul.f32.gmra.mxu0 %v135
    %v1265 = vpop.f32.mrf.mxu0
    %v1266 = vadd.f32 %v1244, %v1265
    %1267 = vmatmul.f32.gmra.mxu0 %v138
    %v1268 = vpop.f32.mrf.mxu0
    %v1269 = vadd.f32 %v1244, %v1268
    %1270 = vmatmul.f32.gmra.mxu0 %v141
    %v1271 = vpop.f32.mrf.mxu0
    %v1272 = vadd.f32 %v1244, %v1271
    %1273 = vmatmul.f32.gmra.mxu0 %v144
    %v1274 = vpop.f32.mrf.mxu0
    %v1275 = vadd.f32 %v1244, %v1274
    %1276 = vmatmul.f32.gmra.mxu0 %v147
    %v1277 = vpop.f32.mrf.mxu0
    %v1278 = vadd.f32 %v1244, %v1277
    %1279 = vmatmul.f32.gmra.mxu0 %v150
    %v1280 = vpop.f32.mrf.mxu0
    %v1281 = vadd.f32 %v1244, %v1280
    %1282 = vmatmul.f32.gmra.mxu0 %v153
    %v1283 = vpop.f32.mrf.mxu0
    %v1284 = vadd.f32 %v1244, %v1283
    %1285 = vmatmul.f32.gmra.mxu0 %v156
    %v1286 = vpop.f32.mrf.mxu0
    %v1287 = vadd.f32 %v1244, %v1286
    %1288 = vmatmul.f32.gmra.mxu0 %v159
    %v1289 = vpop.f32.mrf.mxu0
    %v1290 = vadd.f32 %v1244, %v1289
    %1291 = vdwg.mxu0
    %v1292 = vmax.f32 %v1266, 0.0
    %v1293 = vmax.f32 %v1269, 0.0
    %v1294 = vmax.f32 %v1272, 0.0
    %v1295 = vmax.f32 %v1275, 0.0
    %v1296 = vmax.f32 %v1278, 0.0
    %v1297 = vmax.f32 %v1281, 0.0
    %v1298 = vmax.f32 %v1284, 0.0
    %v1299 = vmax.f32 %v1287, 0.0
    %v1300 = vmax.f32 %v1290, 0.0
    %v1301 = vsel %vm236, %v1292, 0.0
    %v1302 = vsel %vm236, %v1293, 0.0
    %v1303 = vadd.f32 %v1301, %v1302
    %v1304 = vsel %vm236, %v1294, 0.0
    %v1305 = vadd.f32 %v1303, %v1304
    %v1306 = vsel %vm236, %v1295, 0.0
    %v1307 = vadd.f32 %v1305, %v1306
    %v1308 = vsel %vm236, %v1296, 0.0
    %v1309 = vadd.f32 %v1307, %v1308
    %v1310 = vsel %vm236, %v1297, 0.0
    %v1311 = vadd.f32 %v1309, %v1310
    %v1312 = vsel %vm236, %v1298, 0.0
    %v1313 = vadd.f32 %v1311, %v1312
    %v1314 = vsel %vm236, %v1299, 0.0
    %v1315 = vadd.f32 %v1313, %v1314
    %vm1316 = vcmask 519168
    %v1317 = vsel %vm1316, %v1300, 0.0
    %v1318 = vadd.f32 %v1315, %v1317
    %v1319 = vrot.slane %v1318, 4
    %v1320 = vadd.f32 %v1318, %v1319
    %v1321 = vrot.slane %v1320, 2
    %v1322 = vadd.f32 %v1320, %v1321
    %v1323 = vrot.slane %v1322, 1
    %v1324 = vadd.f32 %v1322, %v1323
    %v1325 = vrcp.pop 68.0
    %v1326 = vmul.f32 68.0, %v1325
    %v1327 = vsub.f32 1.0, %v1326
    %v1328 = vmul.f32 %v1325, %v1327
    %v1329 = vadd.f32 %v1325, %v1328
    %vm1330 = vweird.f32 %v1325
    %v1331 = vsel %vm1330, %v1325, %v1329
    %v1332 = vmul.f32 %v1324, %v1331
    %v1333 = vsel %vm236, %v1292, -inf
    %v1334 = vsel %vm236, %v1293, -inf
    %v1335 = vsel %vm236, %v1294, -inf
    %v1336 = vsel %vm236, %v1295, -inf
    %v1337 = vsel %vm236, %v1296, -inf
    %v1338 = vmax.f32 %v1333, %v1337
    %v1339 = vsel %vm236, %v1297, -inf
    %v1340 = vmax.f32 %v1334, %v1339
    %v1341 = vsel %vm236, %v1298, -inf
    %v1342 = vmax.f32 %v1335, %v1341
    %v1343 = vsel %vm236, %v1299, -inf
    %v1344 = vmax.f32 %v1336, %v1343
    %v1345 = vsel %vm1316, %v1300, -inf
    %v1346 = vmax.f32 %v1338, %v1345
    %v1347 = vmax.f32 %v1346, %v1340
    %v1348 = vmax.f32 %v1342, %v1344
    %v1349 = vmax.f32 %v1347, %v1348
    %v1350 = vrot.slane %v1349, 4
    %v1351 = vmax.f32 %v1349, %v1350
    %v1352 = vrot.slane %v1351, 2
    %v1353 = vmax.f32 %v1351, %v1352
    %v1354 = vrot.slane %v1353, 1
    %v1355 = vmax.f32 %v1353, %v1354
    %s1356 = scalar_lea.vmem %s1, 72
    %v1357 = vld [vmem:[%s1356] sm:$0xff]
    %v1358 = vld [vmem:[%s1356 + $0x8] sm:$0xff]
    %v1359 = vld [vmem:[%s1356 + $0x10] sm:$0xff]
    %v1360 = vld [vmem:[%s1356 + $0x18] sm:$0xff]
    %v1361 = vld [vmem:[%s1356 + $0x20] sm:$0xff]
    %v1362 = vld [vmem:[%s1356 + $0x28] sm:$0xff]
    %v1363 = vld [vmem:[%s1356 + $0x30] sm:$0xff]
    %v1364 = vld [vmem:[%s1356 + $0x38] sm:$0xff]
    %v1365 = vld [vmem:[%s1356 + $0x40] sm:$0xf]
    %v1367 = vsel %vm56, %v1357, 0
    %v1370 = vsel %vm56, %v1358, 0
    %v1373 = vsel %vm56, %v1359, 0
    %v1376 = vsel %vm56, %v1360, 0
    %v1379 = vsel %vm56, %v1361, 0
    %v1382 = vsel %vm56, %v1362, 0
    %v1385 = vsel %vm56, %v1363, 0
    %v1388 = vsel %vm56, %v1364, 0
    %v1391 = vsel %vm56, %v1365, 0
    %1393 = vmatpush.msra.mxu0 0.0
    %1394 = vmatpush.msra.mxu0 0.0
    %1395 = vmatpush.msra.mxu0 0.0
    %1396 = vmatpush.msra.mxu0 0.0
    %1397 = vmatpush.msra.mxu0 0.0
    %1398 = vmatpush.msra.mxu0 0.0
    %1399 = vmatpush.msra.mxu0 0.0
    %1400 = vmatpush.msra.mxu0 0.0
    %1401 = vmatpush.msra.mxu0 0.0
    %1402 = vmatpush.msra.mxu0 0.0
    %1403 = vmatpush.msra.mxu0 0.0
    %1404 = vmatpush.msra.mxu0 0.0
    %1405 = vmatpush.msra.mxu0 0.0
    %1406 = vmatpush.msra.mxu0 0.0
    %1407 = vmatpush.msra.mxu0 0.0
    %1408 = vmatpush.msra.mxu0 %v86
    %1409 = vmatmul.f32.gmra.mxu0 %v1367
    %v1410 = vpop.f32.mrf.mxu0
    %v1411 = vadd.f32 0.0, %v1410
    %1412 = vmatmul.f32.gmra.mxu0 %v1370
    %v1413 = vpop.f32.mrf.mxu0
    %v1414 = vadd.f32 0.0, %v1413
    %1415 = vmatmul.f32.gmra.mxu0 %v1373
    %v1416 = vpop.f32.mrf.mxu0
    %v1417 = vadd.f32 0.0, %v1416
    %1418 = vmatmul.f32.gmra.mxu0 %v1376
    %v1419 = vpop.f32.mrf.mxu0
    %v1420 = vadd.f32 0.0, %v1419
    %1421 = vmatmul.f32.gmra.mxu0 %v1379
    %v1422 = vpop.f32.mrf.mxu0
    %v1423 = vadd.f32 0.0, %v1422
    %1424 = vmatmul.f32.gmra.mxu0 %v1382
    %v1425 = vpop.f32.mrf.mxu0
    %v1426 = vadd.f32 0.0, %v1425
    %1427 = vmatmul.f32.gmra.mxu0 %v1385
    %v1428 = vpop.f32.mrf.mxu0
    %v1429 = vadd.f32 0.0, %v1428
    %1430 = vmatmul.f32.gmra.mxu0 %v1388
    %v1431 = vpop.f32.mrf.mxu0
    %v1432 = vadd.f32 0.0, %v1431
    %1433 = vmatmul.f32.gmra.mxu0 %v1391
    %v1434 = vpop.f32.mrf.mxu0
    %v1435 = vadd.f32 0.0, %v1434
    %1436 = vdwg.mxu0
    %v1438 = vsel %vm84, %v1435, 0
    %1440 = vmatpush.msra.mxu0 0.0
    %1441 = vmatpush.msra.mxu0 0.0
    %1442 = vmatpush.msra.mxu0 0.0
    %1443 = vmatpush.msra.mxu0 0.0
    %1444 = vmatpush.msra.mxu0 0.0
    %1445 = vmatpush.msra.mxu0 0.0
    %1446 = vmatpush.msra.mxu0 0.0
    %1447 = vmatpush.msra.mxu0 %v1438
    %1448 = vmatpush.msra.mxu0 %v1432
    %1449 = vmatpush.msra.mxu0 %v1429
    %1450 = vmatpush.msra.mxu0 %v1426
    %1451 = vmatpush.msra.mxu0 %v1423
    %1452 = vmatpush.msra.mxu0 %v1420
    %1453 = vmatpush.msra.mxu0 %v1417
    %1454 = vmatpush.msra.mxu0 %v1414
    %1455 = vmatpush.msra.mxu0 %v1411
    %1456 = vmatmul.f32.gmra.mxu0 %v135
    %v1457 = vpop.f32.mrf.mxu0
    %v1458 = vadd.f32 %v132, %v1457
    %1459 = vmatmul.f32.gmra.mxu0 %v138
    %v1460 = vpop.f32.mrf.mxu0
    %v1461 = vadd.f32 %v132, %v1460
    %1462 = vmatmul.f32.gmra.mxu0 %v141
    %v1463 = vpop.f32.mrf.mxu0
    %v1464 = vadd.f32 %v132, %v1463
    %1465 = vmatmul.f32.gmra.mxu0 %v144
    %v1466 = vpop.f32.mrf.mxu0
    %v1467 = vadd.f32 %v132, %v1466
    %1468 = vmatmul.f32.gmra.mxu0 %v147
    %v1469 = vpop.f32.mrf.mxu0
    %v1470 = vadd.f32 %v132, %v1469
    %1471 = vmatmul.f32.gmra.mxu0 %v150
    %v1472 = vpop.f32.mrf.mxu0
    %v1473 = vadd.f32 %v132, %v1472
    %1474 = vmatmul.f32.gmra.mxu0 %v153
    %v1475 = vpop.f32.mrf.mxu0
    %v1476 = vadd.f32 %v132, %v1475
    %1477 = vmatmul.f32.gmra.mxu0 %v156
    %v1478 = vpop.f32.mrf.mxu0
    %v1479 = vadd.f32 %v132, %v1478
    %1480 = vmatmul.f32.gmra.mxu0 %v159
    %v1481 = vpop.f32.mrf.mxu0
    %v1482 = vadd.f32 %v132, %v1481
    %1483 = vdwg.mxu0
    %v1484 = vmax.f32 %v1458, 0.0
    %v1485 = vmax.f32 %v1461, 0.0
    %v1486 = vmax.f32 %v1464, 0.0
    %v1487 = vmax.f32 %v1467, 0.0
    %v1488 = vmax.f32 %v1470, 0.0
    %v1489 = vmax.f32 %v1473, 0.0
    %v1490 = vmax.f32 %v1476, 0.0
    %v1491 = vmax.f32 %v1479, 0.0
    %v1492 = vmax.f32 %v1482, 0.0
    %v1493 = vadd.f32 %v1484, %v217
    %v1494 = vadd.f32 %v1485, %v217
    %v1495 = vadd.f32 %v1486, %v217
    %v1496 = vadd.f32 %v1487, %v217
    %v1497 = vadd.f32 %v1488, %v217
    %v1498 = vadd.f32 %v1489, %v217
    %v1499 = vadd.f32 %v1490, %v217
    %v1500 = vadd.f32 %v1491, %v217
    %v1501 = vadd.f32 %v1492, %v217
    %v1503 = vsel %vm236, %v1493, 0
    %v1506 = vsel %vm236, %v1494, 0
    %v1509 = vsel %vm236, %v1495, 0
    %v1512 = vsel %vm236, %v1496, 0
    %v1515 = vsel %vm236, %v1497, 0
    %v1518 = vsel %vm236, %v1498, 0
    %v1521 = vsel %vm236, %v1499, 0
    %v1524 = vsel %vm236, %v1500, 0
    %v1527 = vsel %vm236, %v1501, 0
    %1529 = vmatpush.msra.mxu0 0.0
    %1530 = vmatpush.msra.mxu0 0.0
    %1531 = vmatpush.msra.mxu0 0.0
    %1532 = vmatpush.msra.mxu0 0.0
    %1533 = vmatpush.msra.mxu0 0.0
    %1534 = vmatpush.msra.mxu0 0.0
    %1535 = vmatpush.msra.mxu0 0.0
    %1536 = vmatpush.msra.mxu0 0.0
    %1537 = vmatpush.msra.mxu0 %v235
    %1538 = vmatpush.msra.mxu0 %v234
    %1539 = vmatpush.msra.mxu0 %v233
    %1540 = vmatpush.msra.mxu0 %v232
    %1541 = vmatpush.msra.mxu0 %v231
    %1542 = vmatpush.msra.mxu0 %v230
    %1543 = vmatpush.msra.mxu0 %v229
    %1544 = vmatpush.msra.mxu0 %v228
    %1545 = vmatmul.f32.gmra.mxu0 %v1503
    %v1546 = vpop.f32.mrf.mxu0
    %v1547 = vadd.f32 0.0, %v1546
    %1548 = vmatmul.f32.gmra.mxu0 %v1506
    %v1549 = vpop.f32.mrf.mxu0
    %v1550 = vadd.f32 0.0, %v1549
    %1551 = vmatmul.f32.gmra.mxu0 %v1509
    %v1552 = vpop.f32.mrf.mxu0
    %v1553 = vadd.f32 0.0, %v1552
    %1554 = vmatmul.f32.gmra.mxu0 %v1512
    %v1555 = vpop.f32.mrf.mxu0
    %v1556 = vadd.f32 0.0, %v1555
    %1557 = vmatmul.f32.gmra.mxu0 %v1515
    %v1558 = vpop.f32.mrf.mxu0
    %v1559 = vadd.f32 0.0, %v1558
    %1560 = vmatmul.f32.gmra.mxu0 %v1518
    %v1561 = vpop.f32.mrf.mxu0
    %v1562 = vadd.f32 0.0, %v1561
    %1563 = vmatmul.f32.gmra.mxu0 %v1521
    %v1564 = vpop.f32.mrf.mxu0
    %v1565 = vadd.f32 0.0, %v1564
    %1566 = vmatmul.f32.gmra.mxu0 %v1524
    %v1567 = vpop.f32.mrf.mxu0
    %v1568 = vadd.f32 0.0, %v1567
    %1569 = vmatmul.f32.gmra.mxu0 %v1527
    %v1570 = vpop.f32.mrf.mxu0
    %v1571 = vadd.f32 0.0, %v1570
    %1572 = vdwg.mxu0
    %v1574 = vsel %vm84, %v1571, 0
    %1576 = vmatpush.msra.mxu0 0.0
    %1577 = vmatpush.msra.mxu0 0.0
    %1578 = vmatpush.msra.mxu0 0.0
    %1579 = vmatpush.msra.mxu0 0.0
    %1580 = vmatpush.msra.mxu0 0.0
    %1581 = vmatpush.msra.mxu0 0.0
    %1582 = vmatpush.msra.mxu0 0.0
    %1583 = vmatpush.msra.mxu0 %v1574
    %1584 = vmatpush.msra.mxu0 %v1568
    %1585 = vmatpush.msra.mxu0 %v1565
    %1586 = vmatpush.msra.mxu0 %v1562
    %1587 = vmatpush.msra.mxu0 %v1559
    %1588 = vmatpush.msra.mxu0 %v1556
    %1589 = vmatpush.msra.mxu0 %v1553
    %1590 = vmatpush.msra.mxu0 %v1550
    %1591 = vmatpush.msra.mxu0 %v1547
    %1592 = vmatmul.f32.gmra.mxu0 %v135
    %v1593 = vpop.f32.mrf.mxu0
    %v1594 = vadd.f32 %v308, %v1593
    %1595 = vmatmul.f32.gmra.mxu0 %v138
    %v1596 = vpop.f32.mrf.mxu0
    %v1597 = vadd.f32 %v308, %v1596
    %1598 = vmatmul.f32.gmra.mxu0 %v141
    %v1599 = vpop.f32.mrf.mxu0
    %v1600 = vadd.f32 %v308, %v1599
    %1601 = vmatmul.f32.gmra.mxu0 %v144
    %v1602 = vpop.f32.mrf.mxu0
    %v1603 = vadd.f32 %v308, %v1602
    %1604 = vmatmul.f32.gmra.mxu0 %v147
    %v1605 = vpop.f32.mrf.mxu0
    %v1606 = vadd.f32 %v308, %v1605
    %1607 = vmatmul.f32.gmra.mxu0 %v150
    %v1608 = vpop.f32.mrf.mxu0
    %v1609 = vadd.f32 %v308, %v1608
    %1610 = vmatmul.f32.gmra.mxu0 %v153
    %v1611 = vpop.f32.mrf.mxu0
    %v1612 = vadd.f32 %v308, %v1611
    %1613 = vmatmul.f32.gmra.mxu0 %v156
    %v1614 = vpop.f32.mrf.mxu0
    %v1615 = vadd.f32 %v308, %v1614
    %1616 = vmatmul.f32.gmra.mxu0 %v159
    %v1617 = vpop.f32.mrf.mxu0
    %v1618 = vadd.f32 %v308, %v1617
    %1619 = vdwg.mxu0
    %v1620 = vmax.f32 %v1594, 0.0
    %v1621 = vmax.f32 %v1597, 0.0
    %v1622 = vmax.f32 %v1600, 0.0
    %v1623 = vmax.f32 %v1603, 0.0
    %v1624 = vmax.f32 %v1606, 0.0
    %v1625 = vmax.f32 %v1609, 0.0
    %v1626 = vmax.f32 %v1612, 0.0
    %v1627 = vmax.f32 %v1615, 0.0
    %v1628 = vmax.f32 %v1618, 0.0
    %v1629 = vadd.f32 %v1620, %v365
    %v1630 = vadd.f32 %v1621, %v365
    %v1631 = vadd.f32 %v1622, %v365
    %v1632 = vadd.f32 %v1623, %v365
    %v1633 = vadd.f32 %v1624, %v365
    %v1634 = vadd.f32 %v1625, %v365
    %v1635 = vadd.f32 %v1626, %v365
    %v1636 = vadd.f32 %v1627, %v365
    %v1637 = vadd.f32 %v1628, %v365
    %v1638 = vadd.f32 %v1629, %v1493
    %v1639 = vadd.f32 %v1630, %v1494
    %v1640 = vadd.f32 %v1631, %v1495
    %v1641 = vadd.f32 %v1632, %v1496
    %v1642 = vadd.f32 %v1633, %v1497
    %v1643 = vadd.f32 %v1634, %v1498
    %v1644 = vadd.f32 %v1635, %v1499
    %v1645 = vadd.f32 %v1636, %v1500
    %v1646 = vadd.f32 %v1637, %v1501
    %v1648 = vsel %vm236, %v1638, 0
    %v1651 = vsel %vm236, %v1639, 0
    %v1654 = vsel %vm236, %v1640, 0
    %v1657 = vsel %vm236, %v1641, 0
    %v1660 = vsel %vm236, %v1642, 0
    %v1663 = vsel %vm236, %v1643, 0
    %v1666 = vsel %vm236, %v1644, 0
    %v1669 = vsel %vm236, %v1645, 0
    %v1672 = vsel %vm236, %v1646, 0
    %1674 = vmatpush.msra.mxu0 0.0
    %1675 = vmatpush.msra.mxu0 0.0
    %1676 = vmatpush.msra.mxu0 0.0
    %1677 = vmatpush.msra.mxu0 0.0
    %1678 = vmatpush.msra.mxu0 0.0
    %1679 = vmatpush.msra.mxu0 0.0
    %1680 = vmatpush.msra.mxu0 0.0
    %1681 = vmatpush.msra.mxu0 0.0
    %1682 = vmatpush.msra.mxu0 %v392
    %1683 = vmatpush.msra.mxu0 %v391
    %1684 = vmatpush.msra.mxu0 %v390
    %1685 = vmatpush.msra.mxu0 %v389
    %1686 = vmatpush.msra.mxu0 %v388
    %1687 = vmatpush.msra.mxu0 %v387
    %1688 = vmatpush.msra.mxu0 %v386
    %1689 = vmatpush.msra.mxu0 %v385
    %1690 = vmatmul.f32.gmra.mxu0 %v1648
    %v1691 = vpop.f32.mrf.mxu0
    %v1692 = vadd.f32 0.0, %v1691
    %1693 = vmatmul.f32.gmra.mxu0 %v1651
    %v1694 = vpop.f32.mrf.mxu0
    %v1695 = vadd.f32 0.0, %v1694
    %1696 = vmatmul.f32.gmra.mxu0 %v1654
    %v1697 = vpop.f32.mrf.mxu0
    %v1698 = vadd.f32 0.0, %v1697
    %1699 = vmatmul.f32.gmra.mxu0 %v1657
    %v1700 = vpop.f32.mrf.mxu0
    %v1701 = vadd.f32 0.0, %v1700
    %1702 = vmatmul.f32.gmra.mxu0 %v1660
    %v1703 = vpop.f32.mrf.mxu0
    %v1704 = vadd.f32 0.0, %v1703
    %1705 = vmatmul.f32.gmra.mxu0 %v1663
    %v1706 = vpop.f32.mrf.mxu0
    %v1707 = vadd.f32 0.0, %v1706
    %1708 = vmatmul.f32.gmra.mxu0 %v1666
    %v1709 = vpop.f32.mrf.mxu0
    %v1710 = vadd.f32 0.0, %v1709
    %1711 = vmatmul.f32.gmra.mxu0 %v1669
    %v1712 = vpop.f32.mrf.mxu0
    %v1713 = vadd.f32 0.0, %v1712
    %1714 = vmatmul.f32.gmra.mxu0 %v1672
    %v1715 = vpop.f32.mrf.mxu0
    %v1716 = vadd.f32 0.0, %v1715
    %1717 = vdwg.mxu0
    %v1719 = vsel %vm84, %v1716, 0
    %1721 = vmatpush.msra.mxu0 0.0
    %1722 = vmatpush.msra.mxu0 0.0
    %1723 = vmatpush.msra.mxu0 0.0
    %1724 = vmatpush.msra.mxu0 0.0
    %1725 = vmatpush.msra.mxu0 0.0
    %1726 = vmatpush.msra.mxu0 0.0
    %1727 = vmatpush.msra.mxu0 0.0
    %1728 = vmatpush.msra.mxu0 %v1719
    %1729 = vmatpush.msra.mxu0 %v1713
    %1730 = vmatpush.msra.mxu0 %v1710
    %1731 = vmatpush.msra.mxu0 %v1707
    %1732 = vmatpush.msra.mxu0 %v1704
    %1733 = vmatpush.msra.mxu0 %v1701
    %1734 = vmatpush.msra.mxu0 %v1698
    %1735 = vmatpush.msra.mxu0 %v1695
    %1736 = vmatpush.msra.mxu0 %v1692
    %1737 = vmatmul.f32.gmra.mxu0 %v135
    %v1738 = vpop.f32.mrf.mxu0
    %v1739 = vadd.f32 %v464, %v1738
    %1740 = vmatmul.f32.gmra.mxu0 %v138
    %v1741 = vpop.f32.mrf.mxu0
    %v1742 = vadd.f32 %v464, %v1741
    %1743 = vmatmul.f32.gmra.mxu0 %v141
    %v1744 = vpop.f32.mrf.mxu0
    %v1745 = vadd.f32 %v464, %v1744
    %1746 = vmatmul.f32.gmra.mxu0 %v144
    %v1747 = vpop.f32.mrf.mxu0
    %v1748 = vadd.f32 %v464, %v1747
    %1749 = vmatmul.f32.gmra.mxu0 %v147
    %v1750 = vpop.f32.mrf.mxu0
    %v1751 = vadd.f32 %v464, %v1750
    %1752 = vmatmul.f32.gmra.mxu0 %v150
    %v1753 = vpop.f32.mrf.mxu0
    %v1754 = vadd.f32 %v464, %v1753
    %1755 = vmatmul.f32.gmra.mxu0 %v153
    %v1756 = vpop.f32.mrf.mxu0
    %v1757 = vadd.f32 %v464, %v1756
    %1758 = vmatmul.f32.gmra.mxu0 %v156
    %v1759 = vpop.f32.mrf.mxu0
    %v1760 = vadd.f32 %v464, %v1759
    %1761 = vmatmul.f32.gmra.mxu0 %v159
    %v1762 = vpop.f32.mrf.mxu0
    %v1763 = vadd.f32 %v464, %v1762
    %1764 = vdwg.mxu0
    %v1765 = vmax.f32 %v1739, 0.0
    %v1766 = vmax.f32 %v1742, 0.0
    %v1767 = vmax.f32 %v1745, 0.0
    %v1768 = vmax.f32 %v1748, 0.0
    %v1769 = vmax.f32 %v1751, 0.0
    %v1770 = vmax.f32 %v1754, 0.0
    %v1771 = vmax.f32 %v1757, 0.0
    %v1772 = vmax.f32 %v1760, 0.0
    %v1773 = vmax.f32 %v1763, 0.0
    %v1774 = vadd.f32 %v1765, %v521
    %v1775 = vadd.f32 %v1766, %v521
    %v1776 = vadd.f32 %v1767, %v521
    %v1777 = vadd.f32 %v1768, %v521
    %v1778 = vadd.f32 %v1769, %v521
    %v1779 = vadd.f32 %v1770, %v521
    %v1780 = vadd.f32 %v1771, %v521
    %v1781 = vadd.f32 %v1772, %v521
    %v1782 = vadd.f32 %v1773, %v521
    %v1783 = vadd.f32 %v1774, %v1638
    %v1784 = vadd.f32 %v1775, %v1639
    %v1785 = vadd.f32 %v1776, %v1640
    %v1786 = vadd.f32 %v1777, %v1641
    %v1787 = vadd.f32 %v1778, %v1642
    %v1788 = vadd.f32 %v1779, %v1643
    %v1789 = vadd.f32 %v1780, %v1644
    %v1790 = vadd.f32 %v1781, %v1645
    %v1791 = vadd.f32 %v1782, %v1646
    %v1793 = vsel %vm236, %v1783, 0
    %v1796 = vsel %vm236, %v1784, 0
    %v1799 = vsel %vm236, %v1785, 0
    %v1802 = vsel %vm236, %v1786, 0
    %v1805 = vsel %vm236, %v1787, 0
    %v1808 = vsel %vm236, %v1788, 0
    %v1811 = vsel %vm236, %v1789, 0
    %v1814 = vsel %vm236, %v1790, 0
    %v1817 = vsel %vm236, %v1791, 0
    %1819 = vmatpush.msra.mxu0 0.0
    %1820 = vmatpush.msra.mxu0 0.0
    %1821 = vmatpush.msra.mxu0 0.0
    %1822 = vmatpush.msra.mxu0 0.0
    %1823 = vmatpush.msra.mxu0 0.0
    %1824 = vmatpush.msra.mxu0 0.0
    %1825 = vmatpush.msra.mxu0 0.0
    %1826 = vmatpush.msra.mxu0 0.0
    %1827 = vmatpush.msra.mxu0 %v548
    %1828 = vmatpush.msra.mxu0 %v547
    %1829 = vmatpush.msra.mxu0 %v546
    %1830 = vmatpush.msra.mxu0 %v545
    %1831 = vmatpush.msra.mxu0 %v544
    %1832 = vmatpush.msra.mxu0 %v543
    %1833 = vmatpush.msra.mxu0 %v542
    %1834 = vmatpush.msra.mxu0 %v541
    %1835 = vmatmul.f32.gmra.mxu0 %v1793
    %v1836 = vpop.f32.mrf.mxu0
    %v1837 = vadd.f32 0.0, %v1836
    %1838 = vmatmul.f32.gmra.mxu0 %v1796
    %v1839 = vpop.f32.mrf.mxu0
    %v1840 = vadd.f32 0.0, %v1839
    %1841 = vmatmul.f32.gmra.mxu0 %v1799
    %v1842 = vpop.f32.mrf.mxu0
    %v1843 = vadd.f32 0.0, %v1842
    %1844 = vmatmul.f32.gmra.mxu0 %v1802
    %v1845 = vpop.f32.mrf.mxu0
    %v1846 = vadd.f32 0.0, %v1845
    %1847 = vmatmul.f32.gmra.mxu0 %v1805
    %v1848 = vpop.f32.mrf.mxu0
    %v1849 = vadd.f32 0.0, %v1848
    %1850 = vmatmul.f32.gmra.mxu0 %v1808
    %v1851 = vpop.f32.mrf.mxu0
    %v1852 = vadd.f32 0.0, %v1851
    %1853 = vmatmul.f32.gmra.mxu0 %v1811
    %v1854 = vpop.f32.mrf.mxu0
    %v1855 = vadd.f32 0.0, %v1854
    %1856 = vmatmul.f32.gmra.mxu0 %v1814
    %v1857 = vpop.f32.mrf.mxu0
    %v1858 = vadd.f32 0.0, %v1857
    %1859 = vmatmul.f32.gmra.mxu0 %v1817
    %v1860 = vpop.f32.mrf.mxu0
    %v1861 = vadd.f32 0.0, %v1860
    %1862 = vdwg.mxu0
    %v1864 = vsel %vm84, %v1861, 0
    %1866 = vmatpush.msra.mxu0 0.0
    %1867 = vmatpush.msra.mxu0 0.0
    %1868 = vmatpush.msra.mxu0 0.0
    %1869 = vmatpush.msra.mxu0 0.0
    %1870 = vmatpush.msra.mxu0 0.0
    %1871 = vmatpush.msra.mxu0 0.0
    %1872 = vmatpush.msra.mxu0 0.0
    %1873 = vmatpush.msra.mxu0 %v1864
    %1874 = vmatpush.msra.mxu0 %v1858
    %1875 = vmatpush.msra.mxu0 %v1855
    %1876 = vmatpush.msra.mxu0 %v1852
    %1877 = vmatpush.msra.mxu0 %v1849
    %1878 = vmatpush.msra.mxu0 %v1846
    %1879 = vmatpush.msra.mxu0 %v1843
    %1880 = vmatpush.msra.mxu0 %v1840
    %1881 = vmatpush.msra.mxu0 %v1837
    %1882 = vmatmul.f32.gmra.mxu0 %v135
    %v1883 = vpop.f32.mrf.mxu0
    %v1884 = vadd.f32 %v620, %v1883
    %1885 = vmatmul.f32.gmra.mxu0 %v138
    %v1886 = vpop.f32.mrf.mxu0
    %v1887 = vadd.f32 %v620, %v1886
    %1888 = vmatmul.f32.gmra.mxu0 %v141
    %v1889 = vpop.f32.mrf.mxu0
    %v1890 = vadd.f32 %v620, %v1889
    %1891 = vmatmul.f32.gmra.mxu0 %v144
    %v1892 = vpop.f32.mrf.mxu0
    %v1893 = vadd.f32 %v620, %v1892
    %1894 = vmatmul.f32.gmra.mxu0 %v147
    %v1895 = vpop.f32.mrf.mxu0
    %v1896 = vadd.f32 %v620, %v1895
    %1897 = vmatmul.f32.gmra.mxu0 %v150
    %v1898 = vpop.f32.mrf.mxu0
    %v1899 = vadd.f32 %v620, %v1898
    %1900 = vmatmul.f32.gmra.mxu0 %v153
    %v1901 = vpop.f32.mrf.mxu0
    %v1902 = vadd.f32 %v620, %v1901
    %1903 = vmatmul.f32.gmra.mxu0 %v156
    %v1904 = vpop.f32.mrf.mxu0
    %v1905 = vadd.f32 %v620, %v1904
    %1906 = vmatmul.f32.gmra.mxu0 %v159
    %v1907 = vpop.f32.mrf.mxu0
    %v1908 = vadd.f32 %v620, %v1907
    %1909 = vdwg.mxu0
    %v1910 = vmax.f32 %v1884, 0.0
    %v1911 = vmax.f32 %v1887, 0.0
    %v1912 = vmax.f32 %v1890, 0.0
    %v1913 = vmax.f32 %v1893, 0.0
    %v1914 = vmax.f32 %v1896, 0.0
    %v1915 = vmax.f32 %v1899, 0.0
    %v1916 = vmax.f32 %v1902, 0.0
    %v1917 = vmax.f32 %v1905, 0.0
    %v1918 = vmax.f32 %v1908, 0.0
    %v1919 = vadd.f32 %v1910, %v677
    %v1920 = vadd.f32 %v1911, %v677
    %v1921 = vadd.f32 %v1912, %v677
    %v1922 = vadd.f32 %v1913, %v677
    %v1923 = vadd.f32 %v1914, %v677
    %v1924 = vadd.f32 %v1915, %v677
    %v1925 = vadd.f32 %v1916, %v677
    %v1926 = vadd.f32 %v1917, %v677
    %v1927 = vadd.f32 %v1918, %v677
    %v1928 = vadd.f32 %v1919, %v1783
    %v1929 = vadd.f32 %v1920, %v1784
    %v1930 = vadd.f32 %v1921, %v1785
    %v1931 = vadd.f32 %v1922, %v1786
    %v1932 = vadd.f32 %v1923, %v1787
    %v1933 = vadd.f32 %v1924, %v1788
    %v1934 = vadd.f32 %v1925, %v1789
    %v1935 = vadd.f32 %v1926, %v1790
    %v1936 = vadd.f32 %v1927, %v1791
    %v1938 = vsel %vm236, %v1928, 0
    %v1941 = vsel %vm236, %v1929, 0
    %v1944 = vsel %vm236, %v1930, 0
    %v1947 = vsel %vm236, %v1931, 0
    %v1950 = vsel %vm236, %v1932, 0
    %v1953 = vsel %vm236, %v1933, 0
    %v1956 = vsel %vm236, %v1934, 0
    %v1959 = vsel %vm236, %v1935, 0
    %v1962 = vsel %vm236, %v1936, 0
    %1964 = vmatpush.msra.mxu0 0.0
    %1965 = vmatpush.msra.mxu0 0.0
    %1966 = vmatpush.msra.mxu0 0.0
    %1967 = vmatpush.msra.mxu0 0.0
    %1968 = vmatpush.msra.mxu0 0.0
    %1969 = vmatpush.msra.mxu0 0.0
    %1970 = vmatpush.msra.mxu0 0.0
    %1971 = vmatpush.msra.mxu0 0.0
    %1972 = vmatpush.msra.mxu0 %v704
    %1973 = vmatpush.msra.mxu0 %v703
    %1974 = vmatpush.msra.mxu0 %v702
    %1975 = vmatpush.msra.mxu0 %v701
    %1976 = vmatpush.msra.mxu0 %v700
    %1977 = vmatpush.msra.mxu0 %v699
    %1978 = vmatpush.msra.mxu0 %v698
    %1979 = vmatpush.msra.mxu0 %v697
    %1980 = vmatmul.f32.gmra.mxu0 %v1938
    %v1981 = vpop.f32.mrf.mxu0
    %v1982 = vadd.f32 0.0, %v1981
    %1983 = vmatmul.f32.gmra.mxu0 %v1941
    %v1984 = vpop.f32.mrf.mxu0
    %v1985 = vadd.f32 0.0, %v1984
    %1986 = vmatmul.f32.gmra.mxu0 %v1944
    %v1987 = vpop.f32.mrf.mxu0
    %v1988 = vadd.f32 0.0, %v1987
    %1989 = vmatmul.f32.gmra.mxu0 %v1947
    %v1990 = vpop.f32.mrf.mxu0
    %v1991 = vadd.f32 0.0, %v1990
    %1992 = vmatmul.f32.gmra.mxu0 %v1950
    %v1993 = vpop.f32.mrf.mxu0
    %v1994 = vadd.f32 0.0, %v1993
    %1995 = vmatmul.f32.gmra.mxu0 %v1953
    %v1996 = vpop.f32.mrf.mxu0
    %v1997 = vadd.f32 0.0, %v1996
    %1998 = vmatmul.f32.gmra.mxu0 %v1956
    %v1999 = vpop.f32.mrf.mxu0
    %v2000 = vadd.f32 0.0, %v1999
    %2001 = vmatmul.f32.gmra.mxu0 %v1959
    %v2002 = vpop.f32.mrf.mxu0
    %v2003 = vadd.f32 0.0, %v2002
    %2004 = vmatmul.f32.gmra.mxu0 %v1962
    %v2005 = vpop.f32.mrf.mxu0
    %v2006 = vadd.f32 0.0, %v2005
    %2007 = vdwg.mxu0
    %v2009 = vsel %vm84, %v2006, 0
    %2011 = vmatpush.msra.mxu0 0.0
    %2012 = vmatpush.msra.mxu0 0.0
    %2013 = vmatpush.msra.mxu0 0.0
    %2014 = vmatpush.msra.mxu0 0.0
    %2015 = vmatpush.msra.mxu0 0.0
    %2016 = vmatpush.msra.mxu0 0.0
    %2017 = vmatpush.msra.mxu0 0.0
    %2018 = vmatpush.msra.mxu0 %v2009
    %2019 = vmatpush.msra.mxu0 %v2003
    %2020 = vmatpush.msra.mxu0 %v2000
    %2021 = vmatpush.msra.mxu0 %v1997
    %2022 = vmatpush.msra.mxu0 %v1994
    %2023 = vmatpush.msra.mxu0 %v1991
    %2024 = vmatpush.msra.mxu0 %v1988
    %2025 = vmatpush.msra.mxu0 %v1985
    %2026 = vmatpush.msra.mxu0 %v1982
    %2027 = vmatmul.f32.gmra.mxu0 %v135
    %v2028 = vpop.f32.mrf.mxu0
    %v2029 = vadd.f32 %v776, %v2028
    %2030 = vmatmul.f32.gmra.mxu0 %v138
    %v2031 = vpop.f32.mrf.mxu0
    %v2032 = vadd.f32 %v776, %v2031
    %2033 = vmatmul.f32.gmra.mxu0 %v141
    %v2034 = vpop.f32.mrf.mxu0
    %v2035 = vadd.f32 %v776, %v2034
    %2036 = vmatmul.f32.gmra.mxu0 %v144
    %v2037 = vpop.f32.mrf.mxu0
    %v2038 = vadd.f32 %v776, %v2037
    %2039 = vmatmul.f32.gmra.mxu0 %v147
    %v2040 = vpop.f32.mrf.mxu0
    %v2041 = vadd.f32 %v776, %v2040
    %2042 = vmatmul.f32.gmra.mxu0 %v150
    %v2043 = vpop.f32.mrf.mxu0
    %v2044 = vadd.f32 %v776, %v2043
    %2045 = vmatmul.f32.gmra.mxu0 %v153
    %v2046 = vpop.f32.mrf.mxu0
    %v2047 = vadd.f32 %v776, %v2046
    %2048 = vmatmul.f32.gmra.mxu0 %v156
    %v2049 = vpop.f32.mrf.mxu0
    %v2050 = vadd.f32 %v776, %v2049
    %2051 = vmatmul.f32.gmra.mxu0 %v159
    %v2052 = vpop.f32.mrf.mxu0
    %v2053 = vadd.f32 %v776, %v2052
    %2054 = vdwg.mxu0
    %v2055 = vmax.f32 %v2029, 0.0
    %v2056 = vmax.f32 %v2032, 0.0
    %v2057 = vmax.f32 %v2035, 0.0
    %v2058 = vmax.f32 %v2038, 0.0
    %v2059 = vmax.f32 %v2041, 0.0
    %v2060 = vmax.f32 %v2044, 0.0
    %v2061 = vmax.f32 %v2047, 0.0
    %v2062 = vmax.f32 %v2050, 0.0
    %v2063 = vmax.f32 %v2053, 0.0
    %v2064 = vadd.f32 %v2055, %v833
    %v2065 = vadd.f32 %v2056, %v833
    %v2066 = vadd.f32 %v2057, %v833
    %v2067 = vadd.f32 %v2058, %v833
    %v2068 = vadd.f32 %v2059, %v833
    %v2069 = vadd.f32 %v2060, %v833
    %v2070 = vadd.f32 %v2061, %v833
    %v2071 = vadd.f32 %v2062, %v833
    %v2072 = vadd.f32 %v2063, %v833
    %v2073 = vadd.f32 %v2064, %v1928
    %v2074 = vadd.f32 %v2065, %v1929
    %v2075 = vadd.f32 %v2066, %v1930
    %v2076 = vadd.f32 %v2067, %v1931
    %v2077 = vadd.f32 %v2068, %v1932
    %v2078 = vadd.f32 %v2069, %v1933
    %v2079 = vadd.f32 %v2070, %v1934
    %v2080 = vadd.f32 %v2071, %v1935
    %v2081 = vadd.f32 %v2072, %v1936
    %v2083 = vsel %vm236, %v2073, 0
    %v2086 = vsel %vm236, %v2074, 0
    %v2089 = vsel %vm236, %v2075, 0
    %v2092 = vsel %vm236, %v2076, 0
    %v2095 = vsel %vm236, %v2077, 0
    %v2098 = vsel %vm236, %v2078, 0
    %v2101 = vsel %vm236, %v2079, 0
    %v2104 = vsel %vm236, %v2080, 0
    %v2107 = vsel %vm236, %v2081, 0
    %2109 = vmatpush.msra.mxu0 0.0
    %2110 = vmatpush.msra.mxu0 0.0
    %2111 = vmatpush.msra.mxu0 0.0
    %2112 = vmatpush.msra.mxu0 0.0
    %2113 = vmatpush.msra.mxu0 0.0
    %2114 = vmatpush.msra.mxu0 0.0
    %2115 = vmatpush.msra.mxu0 0.0
    %2116 = vmatpush.msra.mxu0 0.0
    %2117 = vmatpush.msra.mxu0 %v860
    %2118 = vmatpush.msra.mxu0 %v859
    %2119 = vmatpush.msra.mxu0 %v858
    %2120 = vmatpush.msra.mxu0 %v857
    %2121 = vmatpush.msra.mxu0 %v856
    %2122 = vmatpush.msra.mxu0 %v855
    %2123 = vmatpush.msra.mxu0 %v854
    %2124 = vmatpush.msra.mxu0 %v853
    %2125 = vmatmul.f32.gmra.mxu0 %v2083
    %v2126 = vpop.f32.mrf.mxu0
    %v2127 = vadd.f32 0.0, %v2126
    %2128 = vmatmul.f32.gmra.mxu0 %v2086
    %v2129 = vpop.f32.mrf.mxu0
    %v2130 = vadd.f32 0.0, %v2129
    %2131 = vmatmul.f32.gmra.mxu0 %v2089
    %v2132 = vpop.f32.mrf.mxu0
    %v2133 = vadd.f32 0.0, %v2132
    %2134 = vmatmul.f32.gmra.mxu0 %v2092
    %v2135 = vpop.f32.mrf.mxu0
    %v2136 = vadd.f32 0.0, %v2135
    %2137 = vmatmul.f32.gmra.mxu0 %v2095
    %v2138 = vpop.f32.mrf.mxu0
    %v2139 = vadd.f32 0.0, %v2138
    %2140 = vmatmul.f32.gmra.mxu0 %v2098
    %v2141 = vpop.f32.mrf.mxu0
    %v2142 = vadd.f32 0.0, %v2141
    %2143 = vmatmul.f32.gmra.mxu0 %v2101
    %v2144 = vpop.f32.mrf.mxu0
    %v2145 = vadd.f32 0.0, %v2144
    %2146 = vmatmul.f32.gmra.mxu0 %v2104
    %v2147 = vpop.f32.mrf.mxu0
    %v2148 = vadd.f32 0.0, %v2147
    %2149 = vmatmul.f32.gmra.mxu0 %v2107
    %v2150 = vpop.f32.mrf.mxu0
    %v2151 = vadd.f32 0.0, %v2150
    %2152 = vdwg.mxu0
    %v2154 = vsel %vm84, %v2151, 0
    %2156 = vmatpush.msra.mxu0 0.0
    %2157 = vmatpush.msra.mxu0 0.0
    %2158 = vmatpush.msra.mxu0 0.0
    %2159 = vmatpush.msra.mxu0 0.0
    %2160 = vmatpush.msra.mxu0 0.0
    %2161 = vmatpush.msra.mxu0 0.0
    %2162 = vmatpush.msra.mxu0 0.0
    %2163 = vmatpush.msra.mxu0 %v2154
    %2164 = vmatpush.msra.mxu0 %v2148
    %2165 = vmatpush.msra.mxu0 %v2145
    %2166 = vmatpush.msra.mxu0 %v2142
    %2167 = vmatpush.msra.mxu0 %v2139
    %2168 = vmatpush.msra.mxu0 %v2136
    %2169 = vmatpush.msra.mxu0 %v2133
    %2170 = vmatpush.msra.mxu0 %v2130
    %2171 = vmatpush.msra.mxu0 %v2127
    %2172 = vmatmul.f32.gmra.mxu0 %v135
    %v2173 = vpop.f32.mrf.mxu0
    %v2174 = vadd.f32 %v932, %v2173
    %2175 = vmatmul.f32.gmra.mxu0 %v138
    %v2176 = vpop.f32.mrf.mxu0
    %v2177 = vadd.f32 %v932, %v2176
    %2178 = vmatmul.f32.gmra.mxu0 %v141
    %v2179 = vpop.f32.mrf.mxu0
    %v2180 = vadd.f32 %v932, %v2179
    %2181 = vmatmul.f32.gmra.mxu0 %v144
    %v2182 = vpop.f32.mrf.mxu0
    %v2183 = vadd.f32 %v932, %v2182
    %2184 = vmatmul.f32.gmra.mxu0 %v147
    %v2185 = vpop.f32.mrf.mxu0
    %v2186 = vadd.f32 %v932, %v2185
    %2187 = vmatmul.f32.gmra.mxu0 %v150
    %v2188 = vpop.f32.mrf.mxu0
    %v2189 = vadd.f32 %v932, %v2188
    %2190 = vmatmul.f32.gmra.mxu0 %v153
    %v2191 = vpop.f32.mrf.mxu0
    %v2192 = vadd.f32 %v932, %v2191
    %2193 = vmatmul.f32.gmra.mxu0 %v156
    %v2194 = vpop.f32.mrf.mxu0
    %v2195 = vadd.f32 %v932, %v2194
    %2196 = vmatmul.f32.gmra.mxu0 %v159
    %v2197 = vpop.f32.mrf.mxu0
    %v2198 = vadd.f32 %v932, %v2197
    %2199 = vdwg.mxu0
    %v2200 = vmax.f32 %v2174, 0.0
    %v2201 = vmax.f32 %v2177, 0.0
    %v2202 = vmax.f32 %v2180, 0.0
    %v2203 = vmax.f32 %v2183, 0.0
    %v2204 = vmax.f32 %v2186, 0.0
    %v2205 = vmax.f32 %v2189, 0.0
    %v2206 = vmax.f32 %v2192, 0.0
    %v2207 = vmax.f32 %v2195, 0.0
    %v2208 = vmax.f32 %v2198, 0.0
    %v2209 = vadd.f32 %v2200, %v989
    %v2210 = vadd.f32 %v2201, %v989
    %v2211 = vadd.f32 %v2202, %v989
    %v2212 = vadd.f32 %v2203, %v989
    %v2213 = vadd.f32 %v2204, %v989
    %v2214 = vadd.f32 %v2205, %v989
    %v2215 = vadd.f32 %v2206, %v989
    %v2216 = vadd.f32 %v2207, %v989
    %v2217 = vadd.f32 %v2208, %v989
    %v2218 = vadd.f32 %v2209, %v2073
    %v2219 = vadd.f32 %v2210, %v2074
    %v2220 = vadd.f32 %v2211, %v2075
    %v2221 = vadd.f32 %v2212, %v2076
    %v2222 = vadd.f32 %v2213, %v2077
    %v2223 = vadd.f32 %v2214, %v2078
    %v2224 = vadd.f32 %v2215, %v2079
    %v2225 = vadd.f32 %v2216, %v2080
    %v2226 = vadd.f32 %v2217, %v2081
    %v2228 = vsel %vm236, %v2218, 0
    %v2231 = vsel %vm236, %v2219, 0
    %v2234 = vsel %vm236, %v2220, 0
    %v2237 = vsel %vm236, %v2221, 0
    %v2240 = vsel %vm236, %v2222, 0
    %v2243 = vsel %vm236, %v2223, 0
    %v2246 = vsel %vm236, %v2224, 0
    %v2249 = vsel %vm236, %v2225, 0
    %v2252 = vsel %vm236, %v2226, 0
    %2254 = vmatpush.msra.mxu0 0.0
    %2255 = vmatpush.msra.mxu0 0.0
    %2256 = vmatpush.msra.mxu0 0.0
    %2257 = vmatpush.msra.mxu0 0.0
    %2258 = vmatpush.msra.mxu0 0.0
    %2259 = vmatpush.msra.mxu0 0.0
    %2260 = vmatpush.msra.mxu0 0.0
    %2261 = vmatpush.msra.mxu0 0.0
    %2262 = vmatpush.msra.mxu0 %v1016
    %2263 = vmatpush.msra.mxu0 %v1015
    %2264 = vmatpush.msra.mxu0 %v1014
    %2265 = vmatpush.msra.mxu0 %v1013
    %2266 = vmatpush.msra.mxu0 %v1012
    %2267 = vmatpush.msra.mxu0 %v1011
    %2268 = vmatpush.msra.mxu0 %v1010
    %2269 = vmatpush.msra.mxu0 %v1009
    %2270 = vmatmul.f32.gmra.mxu0 %v2228
    %v2271 = vpop.f32.mrf.mxu0
    %v2272 = vadd.f32 0.0, %v2271
    %2273 = vmatmul.f32.gmra.mxu0 %v2231
    %v2274 = vpop.f32.mrf.mxu0
    %v2275 = vadd.f32 0.0, %v2274
    %2276 = vmatmul.f32.gmra.mxu0 %v2234
    %v2277 = vpop.f32.mrf.mxu0
    %v2278 = vadd.f32 0.0, %v2277
    %2279 = vmatmul.f32.gmra.mxu0 %v2237
    %v2280 = vpop.f32.mrf.mxu0
    %v2281 = vadd.f32 0.0, %v2280
    %2282 = vmatmul.f32.gmra.mxu0 %v2240
    %v2283 = vpop.f32.mrf.mxu0
    %v2284 = vadd.f32 0.0, %v2283
    %2285 = vmatmul.f32.gmra.mxu0 %v2243
    %v2286 = vpop.f32.mrf.mxu0
    %v2287 = vadd.f32 0.0, %v2286
    %2288 = vmatmul.f32.gmra.mxu0 %v2246
    %v2289 = vpop.f32.mrf.mxu0
    %v2290 = vadd.f32 0.0, %v2289
    %2291 = vmatmul.f32.gmra.mxu0 %v2249
    %v2292 = vpop.f32.mrf.mxu0
    %v2293 = vadd.f32 0.0, %v2292
    %2294 = vmatmul.f32.gmra.mxu0 %v2252
    %v2295 = vpop.f32.mrf.mxu0
    %v2296 = vadd.f32 0.0, %v2295
    %2297 = vdwg.mxu0
    %v2299 = vsel %vm84, %v2296, 0
    %2301 = vmatpush.msra.mxu0 0.0
    %2302 = vmatpush.msra.mxu0 0.0
    %2303 = vmatpush.msra.mxu0 0.0
    %2304 = vmatpush.msra.mxu0 0.0
    %2305 = vmatpush.msra.mxu0 0.0
    %2306 = vmatpush.msra.mxu0 0.0
    %2307 = vmatpush.msra.mxu0 0.0
    %2308 = vmatpush.msra.mxu0 %v2299
    %2309 = vmatpush.msra.mxu0 %v2293
    %2310 = vmatpush.msra.mxu0 %v2290
    %2311 = vmatpush.msra.mxu0 %v2287
    %2312 = vmatpush.msra.mxu0 %v2284
    %2313 = vmatpush.msra.mxu0 %v2281
    %2314 = vmatpush.msra.mxu0 %v2278
    %2315 = vmatpush.msra.mxu0 %v2275
    %2316 = vmatpush.msra.mxu0 %v2272
    %2317 = vmatmul.f32.gmra.mxu0 %v135
    %v2318 = vpop.f32.mrf.mxu0
    %v2319 = vadd.f32 %v1088, %v2318
    %2320 = vmatmul.f32.gmra.mxu0 %v138
    %v2321 = vpop.f32.mrf.mxu0
    %v2322 = vadd.f32 %v1088, %v2321
    %2323 = vmatmul.f32.gmra.mxu0 %v141
    %v2324 = vpop.f32.mrf.mxu0
    %v2325 = vadd.f32 %v1088, %v2324
    %2326 = vmatmul.f32.gmra.mxu0 %v144
    %v2327 = vpop.f32.mrf.mxu0
    %v2328 = vadd.f32 %v1088, %v2327
    %2329 = vmatmul.f32.gmra.mxu0 %v147
    %v2330 = vpop.f32.mrf.mxu0
    %v2331 = vadd.f32 %v1088, %v2330
    %2332 = vmatmul.f32.gmra.mxu0 %v150
    %v2333 = vpop.f32.mrf.mxu0
    %v2334 = vadd.f32 %v1088, %v2333
    %2335 = vmatmul.f32.gmra.mxu0 %v153
    %v2336 = vpop.f32.mrf.mxu0
    %v2337 = vadd.f32 %v1088, %v2336
    %2338 = vmatmul.f32.gmra.mxu0 %v156
    %v2339 = vpop.f32.mrf.mxu0
    %v2340 = vadd.f32 %v1088, %v2339
    %2341 = vmatmul.f32.gmra.mxu0 %v159
    %v2342 = vpop.f32.mrf.mxu0
    %v2343 = vadd.f32 %v1088, %v2342
    %2344 = vdwg.mxu0
    %v2345 = vmax.f32 %v2319, 0.0
    %v2346 = vmax.f32 %v2322, 0.0
    %v2347 = vmax.f32 %v2325, 0.0
    %v2348 = vmax.f32 %v2328, 0.0
    %v2349 = vmax.f32 %v2331, 0.0
    %v2350 = vmax.f32 %v2334, 0.0
    %v2351 = vmax.f32 %v2337, 0.0
    %v2352 = vmax.f32 %v2340, 0.0
    %v2353 = vmax.f32 %v2343, 0.0
    %v2354 = vadd.f32 %v2345, %v1145
    %v2355 = vadd.f32 %v2346, %v1145
    %v2356 = vadd.f32 %v2347, %v1145
    %v2357 = vadd.f32 %v2348, %v1145
    %v2358 = vadd.f32 %v2349, %v1145
    %v2359 = vadd.f32 %v2350, %v1145
    %v2360 = vadd.f32 %v2351, %v1145
    %v2361 = vadd.f32 %v2352, %v1145
    %v2362 = vadd.f32 %v2353, %v1145
    %v2363 = vadd.f32 %v2354, %v2218
    %v2364 = vadd.f32 %v2355, %v2219
    %v2365 = vadd.f32 %v2356, %v2220
    %v2366 = vadd.f32 %v2357, %v2221
    %v2367 = vadd.f32 %v2358, %v2222
    %v2368 = vadd.f32 %v2359, %v2223
    %v2369 = vadd.f32 %v2360, %v2224
    %v2370 = vadd.f32 %v2361, %v2225
    %v2371 = vadd.f32 %v2362, %v2226
    %v2373 = vsel %vm236, %v2363, 0
    %v2376 = vsel %vm236, %v2364, 0
    %v2379 = vsel %vm236, %v2365, 0
    %v2382 = vsel %vm236, %v2366, 0
    %v2385 = vsel %vm236, %v2367, 0
    %v2388 = vsel %vm236, %v2368, 0
    %v2391 = vsel %vm236, %v2369, 0
    %v2394 = vsel %vm236, %v2370, 0
    %v2397 = vsel %vm236, %v2371, 0
    %2399 = vmatpush.msra.mxu0 0.0
    %2400 = vmatpush.msra.mxu0 0.0
    %2401 = vmatpush.msra.mxu0 0.0
    %2402 = vmatpush.msra.mxu0 0.0
    %2403 = vmatpush.msra.mxu0 0.0
    %2404 = vmatpush.msra.mxu0 0.0
    %2405 = vmatpush.msra.mxu0 0.0
    %2406 = vmatpush.msra.mxu0 0.0
    %2407 = vmatpush.msra.mxu0 %v1172
    %2408 = vmatpush.msra.mxu0 %v1171
    %2409 = vmatpush.msra.mxu0 %v1170
    %2410 = vmatpush.msra.mxu0 %v1169
    %2411 = vmatpush.msra.mxu0 %v1168
    %2412 = vmatpush.msra.mxu0 %v1167
    %2413 = vmatpush.msra.mxu0 %v1166
    %2414 = vmatpush.msra.mxu0 %v1165
    %2415 = vmatmul.f32.gmra.mxu0 %v2373
    %v2416 = vpop.f32.mrf.mxu0
    %v2417 = vadd.f32 0.0, %v2416
    %2418 = vmatmul.f32.gmra.mxu0 %v2376
    %v2419 = vpop.f32.mrf.mxu0
    %v2420 = vadd.f32 0.0, %v2419
    %2421 = vmatmul.f32.gmra.mxu0 %v2379
    %v2422 = vpop.f32.mrf.mxu0
    %v2423 = vadd.f32 0.0, %v2422
    %2424 = vmatmul.f32.gmra.mxu0 %v2382
    %v2425 = vpop.f32.mrf.mxu0
    %v2426 = vadd.f32 0.0, %v2425
    %2427 = vmatmul.f32.gmra.mxu0 %v2385
    %v2428 = vpop.f32.mrf.mxu0
    %v2429 = vadd.f32 0.0, %v2428
    %2430 = vmatmul.f32.gmra.mxu0 %v2388
    %v2431 = vpop.f32.mrf.mxu0
    %v2432 = vadd.f32 0.0, %v2431
    %2433 = vmatmul.f32.gmra.mxu0 %v2391
    %v2434 = vpop.f32.mrf.mxu0
    %v2435 = vadd.f32 0.0, %v2434
    %2436 = vmatmul.f32.gmra.mxu0 %v2394
    %v2437 = vpop.f32.mrf.mxu0
    %v2438 = vadd.f32 0.0, %v2437
    %2439 = vmatmul.f32.gmra.mxu0 %v2397
    %v2440 = vpop.f32.mrf.mxu0
    %v2441 = vadd.f32 0.0, %v2440
    %2442 = vdwg.mxu0
    %v2444 = vsel %vm84, %v2441, 0
    %2446 = vmatpush.msra.mxu0 0.0
    %2447 = vmatpush.msra.mxu0 0.0
    %2448 = vmatpush.msra.mxu0 0.0
    %2449 = vmatpush.msra.mxu0 0.0
    %2450 = vmatpush.msra.mxu0 0.0
    %2451 = vmatpush.msra.mxu0 0.0
    %2452 = vmatpush.msra.mxu0 0.0
    %2453 = vmatpush.msra.mxu0 %v2444
    %2454 = vmatpush.msra.mxu0 %v2438
    %2455 = vmatpush.msra.mxu0 %v2435
    %2456 = vmatpush.msra.mxu0 %v2432
    %2457 = vmatpush.msra.mxu0 %v2429
    %2458 = vmatpush.msra.mxu0 %v2426
    %2459 = vmatpush.msra.mxu0 %v2423
    %2460 = vmatpush.msra.mxu0 %v2420
    %2461 = vmatpush.msra.mxu0 %v2417
    %2462 = vmatmul.f32.gmra.mxu0 %v135
    %v2463 = vpop.f32.mrf.mxu0
    %v2464 = vadd.f32 %v1244, %v2463
    %2465 = vmatmul.f32.gmra.mxu0 %v138
    %v2466 = vpop.f32.mrf.mxu0
    %v2467 = vadd.f32 %v1244, %v2466
    %2468 = vmatmul.f32.gmra.mxu0 %v141
    %v2469 = vpop.f32.mrf.mxu0
    %v2470 = vadd.f32 %v1244, %v2469
    %2471 = vmatmul.f32.gmra.mxu0 %v144
    %v2472 = vpop.f32.mrf.mxu0
    %v2473 = vadd.f32 %v1244, %v2472
    %2474 = vmatmul.f32.gmra.mxu0 %v147
    %v2475 = vpop.f32.mrf.mxu0
    %v2476 = vadd.f32 %v1244, %v2475
    %2477 = vmatmul.f32.gmra.mxu0 %v150
    %v2478 = vpop.f32.mrf.mxu0
    %v2479 = vadd.f32 %v1244, %v2478
    %2480 = vmatmul.f32.gmra.mxu0 %v153
    %v2481 = vpop.f32.mrf.mxu0
    %v2482 = vadd.f32 %v1244, %v2481
    %2483 = vmatmul.f32.gmra.mxu0 %v156
    %v2484 = vpop.f32.mrf.mxu0
    %v2485 = vadd.f32 %v1244, %v2484
    %2486 = vmatmul.f32.gmra.mxu0 %v159
    %v2487 = vpop.f32.mrf.mxu0
    %v2488 = vadd.f32 %v1244, %v2487
    %2489 = vdwg.mxu0
    %v2490 = vmax.f32 %v2464, 0.0
    %v2491 = vmax.f32 %v2467, 0.0
    %v2492 = vmax.f32 %v2470, 0.0
    %v2493 = vmax.f32 %v2473, 0.0
    %v2494 = vmax.f32 %v2476, 0.0
    %v2495 = vmax.f32 %v2479, 0.0
    %v2496 = vmax.f32 %v2482, 0.0
    %v2497 = vmax.f32 %v2485, 0.0
    %v2498 = vmax.f32 %v2488, 0.0
    %v2499 = vsel %vm236, %v2490, 0.0
    %v2500 = vsel %vm236, %v2491, 0.0
    %v2501 = vadd.f32 %v2499, %v2500
    %v2502 = vsel %vm236, %v2492, 0.0
    %v2503 = vadd.f32 %v2501, %v2502
    %v2504 = vsel %vm236, %v2493, 0.0
    %v2505 = vadd.f32 %v2503, %v2504
    %v2506 = vsel %vm236, %v2494, 0.0
    %v2507 = vadd.f32 %v2505, %v2506
    %v2508 = vsel %vm236, %v2495, 0.0
    %v2509 = vadd.f32 %v2507, %v2508
    %v2510 = vsel %vm236, %v2496, 0.0
    %v2511 = vadd.f32 %v2509, %v2510
    %v2512 = vsel %vm236, %v2497, 0.0
    %v2513 = vadd.f32 %v2511, %v2512
    %v2514 = vsel %vm1316, %v2498, 0.0
    %v2515 = vadd.f32 %v2513, %v2514
    %v2516 = vrot.slane %v2515, 4
    %v2517 = vadd.f32 %v2515, %v2516
    %v2518 = vrot.slane %v2517, 2
    %v2519 = vadd.f32 %v2517, %v2518
    %v2520 = vrot.slane %v2519, 1
    %v2521 = vadd.f32 %v2519, %v2520
    %v2522 = vmul.f32 %v2521, %v1331
    %v2523 = vsel %vm236, %v2490, -inf
    %v2524 = vsel %vm236, %v2491, -inf
    %v2525 = vsel %vm236, %v2492, -inf
    %v2526 = vsel %vm236, %v2493, -inf
    %v2527 = vsel %vm236, %v2494, -inf
    %v2528 = vmax.f32 %v2523, %v2527
    %v2529 = vsel %vm236, %v2495, -inf
    %v2530 = vmax.f32 %v2524, %v2529
    %v2531 = vsel %vm236, %v2496, -inf
    %v2532 = vmax.f32 %v2525, %v2531
    %v2533 = vsel %vm236, %v2497, -inf
    %v2534 = vmax.f32 %v2526, %v2533
    %v2535 = vsel %vm1316, %v2498, -inf
    %v2536 = vmax.f32 %v2528, %v2535
    %v2537 = vmax.f32 %v2536, %v2530
    %v2538 = vmax.f32 %v2532, %v2534
    %v2539 = vmax.f32 %v2537, %v2538
    %v2540 = vrot.slane %v2539, 4
    %v2541 = vmax.f32 %v2539, %v2540
    %v2542 = vrot.slane %v2541, 2
    %v2543 = vmax.f32 %v2541, %v2542
    %v2544 = vrot.slane %v2543, 1
    %v2545 = vmax.f32 %v2543, %v2544
    %vm2546 = vcmask 1040384
    %v2547 = vsel %vm2546, %v1332, %v2522
    %v2548 = vsel %vm2546, %v1355, %v2545
    %s2549 = scalar_lea.vmem [#allocation2], 512
    %v2550 = vld [vmem:[%s2549] sm:$0xff]
    %v2551 = vld [vmem:[%s2549 + $0x8] sm:$0xff]
    %v2552 = vld [vmem:[%s2549 + $0x10] sm:$0xff]
    %v2553 = vld [vmem:[%s2549 + $0x18] sm:$0xff]
    %v2554 = vld [vmem:[%s2549 + $0x20] sm:$0xff]
    %v2555 = vld [vmem:[%s2549 + $0x28] sm:$0xff]
    %v2556 = vld [vmem:[%s2549 + $0x30] sm:$0xff]
    %v2557 = vld [vmem:[%s2549 + $0x38] sm:$0xff]
    %s2558 = scalar_lea.vmem [#allocation2], 576
    %v2559 = vld [vmem:[%s2558] sm:$0xff]
    %v2560 = vld [vmem:[%s2558 + $0x8] sm:$0xff]
    %v2561 = vld [vmem:[%s2558 + $0x10] sm:$0xff]
    %v2562 = vld [vmem:[%s2558 + $0x18] sm:$0xff]
    %v2563 = vld [vmem:[%s2558 + $0x20] sm:$0xff]
    %v2564 = vld [vmem:[%s2558 + $0x28] sm:$0xff]
    %v2565 = vld [vmem:[%s2558 + $0x30] sm:$0xff]
    %v2566 = vld [vmem:[%s2558 + $0x38] sm:$0xff]
    %v2568 = vsel %vm236, %v2548, 0
    %2570 = vmatpush.msra.mxu0 0.0
    %2571 = vmatpush.msra.mxu0 0.0
    %2572 = vmatpush.msra.mxu0 0.0
    %2573 = vmatpush.msra.mxu0 0.0
    %2574 = vmatpush.msra.mxu0 0.0
    %2575 = vmatpush.msra.mxu0 0.0
    %2576 = vmatpush.msra.mxu0 0.0
    %2577 = vmatpush.msra.mxu0 0.0
    %2578 = vmatpush.msra.mxu0 %v2566
    %2579 = vmatpush.msra.mxu0 %v2565
    %2580 = vmatpush.msra.mxu0 %v2564
    %2581 = vmatpush.msra.mxu0 %v2563
    %2582 = vmatpush.msra.mxu0 %v2562
    %2583 = vmatpush.msra.mxu0 %v2561
    %2584 = vmatpush.msra.mxu0 %v2560
    %2585 = vmatpush.msra.mxu0 %v2559
    %2586 = vmatmul.f32.gmra.mxu0 %v2568
    %v2587 = vpop.f32.mrf.mxu0
    %v2588 = vadd.f32 0.0, %v2587
    %2589 = vdwg.mxu0
    %v2591 = vsel %vm236, %v2547, 0
    %2593 = vmatpush.msra.mxu0 0.0
    %2594 = vmatpush.msra.mxu0 0.0
    %2595 = vmatpush.msra.mxu0 0.0
    %2596 = vmatpush.msra.mxu0 0.0
    %2597 = vmatpush.msra.mxu0 0.0
    %2598 = vmatpush.msra.mxu0 0.0
    %2599 = vmatpush.msra.mxu0 0.0
    %2600 = vmatpush.msra.mxu0 0.0
    %2601 = vmatpush.msra.mxu0 %v2557
    %2602 = vmatpush.msra.mxu0 %v2556
    %2603 = vmatpush.msra.mxu0 %v2555
    %2604 = vmatpush.msra.mxu0 %v2554
    %2605 = vmatpush.msra.mxu0 %v2553
    %2606 = vmatpush.msra.mxu0 %v2552
    %2607 = vmatpush.msra.mxu0 %v2551
    %2608 = vmatpush.msra.mxu0 %v2550
    %2609 = vmatmul.f32.gmra.mxu0 %v2591
    %v2610 = vpop.f32.mrf.mxu0
    %v2611 = vadd.f32 %v2588, %v2610
    %2612 = vdwg.mxu0
    %v2613 = vperm.slane %v44, 7
    %v2614 = vadd.f32 %v2611, %v2613
    %v2615 = vmax.f32 %v2614, 0.0
    %s2616 = scalar_lea.vmem [#allocation2], 640
    %v2617 = vld [vmem:[%s2616] sm:$0xff]
    %v2618 = vld [vmem:[%s2616 + $0x8] sm:$0xff]
    %v2619 = vld [vmem:[%s2616 + $0x10] sm:$0xff]
    %v2620 = vld [vmem:[%s2616 + $0x18] sm:$0xff]
    %v2621 = vld [vmem:[%s2616 + $0x20] sm:$0xff]
    %v2622 = vld [vmem:[%s2616 + $0x28] sm:$0xff]
    %v2623 = vld [vmem:[%s2616 + $0x30] sm:$0xff]
    %v2624 = vld [vmem:[%s2616 + $0x38] sm:$0xff]
    %v2625 = vperm.slane %v45, 0
    %v2627 = vsel %vm236, %v2615, 0
    %2629 = vmatpush.msra.mxu0 0.0
    %2630 = vmatpush.msra.mxu0 0.0
    %2631 = vmatpush.msra.mxu0 0.0
    %2632 = vmatpush.msra.mxu0 0.0
    %2633 = vmatpush.msra.mxu0 0.0
    %2634 = vmatpush.msra.mxu0 0.0
    %2635 = vmatpush.msra.mxu0 0.0
    %2636 = vmatpush.msra.mxu0 0.0
    %2637 = vmatpush.msra.mxu0 %v2624
    %2638 = vmatpush.msra.mxu0 %v2623
    %2639 = vmatpush.msra.mxu0 %v2622
    %2640 = vmatpush.msra.mxu0 %v2621
    %2641 = vmatpush.msra.mxu0 %v2620
    %2642 = vmatpush.msra.mxu0 %v2619
    %2643 = vmatpush.msra.mxu0 %v2618
    %2644 = vmatpush.msra.mxu0 %v2617
    %2645 = vmatmul.f32.gmra.mxu0 %v2627
    %v2646 = vpop.f32.mrf.mxu0
    %v2647 = vadd.f32 %v2625, %v2646
    %2648 = vdwg.mxu0
    %vm2649 = vcmask 50176
    %2650 = vst.msk [vmem:[#allocation5] sm:$0x3] %vm2649, %v2647
    // Predicated region
    $region22: #{simple_gcn_forward.1} parent=1 // pred_check
      _
    $region23: #{simple_gcn_forward.1} parent=1 // pred_check_branch
      %2652 = sbr.rel (0) target = $region25
    $region24: #{simple_gcn_forward.1} parent=1 // pred_region
      %2654 = vsyncadd [#allocation4], 0
      %s2656 = sshll.u32 [#allocation5], 4
      %s2657 = int_to_ptr.vmem [resolvable:$true] %s2656
      %s2658 = sshll.u32 %s4, 4
      %s2659 = int_to_ptr.hbm [resolvable:$true] %s2658
      %2661 = dma.vmem_to_hbm [thread:$0]  %s2657, 32, %s2659, [#allocation4]
    $region25: #{simple_gcn_forward.1} parent=1 // pred_fallthru
      _
    // Predicated region
    $region26: #{simple_gcn_forward.1} parent=1 // pred_check
      _
    $region27: #{simple_gcn_forward.1} parent=1 // pred_check_branch
      %2663 = sbr.rel (0) target = $region29
    $region28: #{simple_gcn_forward.1} parent=1 // pred_region
      %2665 = dma.done [#allocation4], 32
    $region29: #{simple_gcn_forward.1} parent=1 // pred_fallthru
      _
    %2666 = vsyncpa [#allocation3], 1
    %2667 = vsyncpa [#allocation4], 1

</llo_original>
